<compile_context>
chip_gen: v6e
topology: v6e:2x2x1
jax: 0.10.0
libtpu: 0.0.40
codegen_flags: <defaults>
</compile_context>

<pallas_src>
import math
import functools

import jax
import jax.numpy as jnp
from jax.experimental import pallas as pl
from jax.experimental.pallas import tpu as pltpu


def encoder_layer_kernel(
    x_ref, bias_ref, keep_ref,
    wq_ref, wk_ref, wv_ref, wo_ref, rel_ref,
    ln1_g_ref, ln1_b_ref, w1_ref, b1_ref, w2_ref, b2_ref,
    ln2_g_ref, ln2_b_ref,
    *out_refs, n_head, d_k, d_v, with_attn,
):
    f32 = jnp.float32
    bf16 = jnp.bfloat16

    if with_attn:
        out_ref, attn_ref, o_scratch = out_refs
    else:
        out_ref, o_scratch = out_refs
        attn_ref = None

    Bb, L, _ = bias_ref.shape          # batches in this block, seq len
    H = n_head

    x = x_ref[...]                     # (Bb*L, D) f32  -- batch folded into MXU M dim
    xb = x.astype(bf16)

    # ---- QKV projections: full-width bf16 matmuls (good MXU N fill) ----------
    # 1/sqrt(d_k) is already folded into Wq by the wrapper.
    q = jnp.dot(xb, wq_ref[...], preferred_element_type=f32)    # (Bb*L, H*d_k)
    k = jnp.dot(xb, wk_ref[...], preferred_element_type=f32)    # (Bb*L, H*d_k)
    v = jnp.dot(xb, wv_ref[...], preferred_element_type=f32)    # (Bb*L, H*d_v)

    q3 = q.reshape(Bb, L, H * d_k)
    k3 = k.reshape(Bb, L, H * d_k)
    v3 = v.reshape(Bb, L, H * d_v)

    bias = bias_ref[...]               # (Bb, L, L) additive mask bias (-1e9 where masked)

    # ---- self-attention: per-head, batched over the Bb batches ---------------
    for h in range(H):                 # static unroll over heads
        qh = q3[:, :, h * d_k:(h + 1) * d_k].astype(bf16)       # (Bb, L, d_k)
        kh = k3[:, :, h * d_k:(h + 1) * d_k].astype(bf16)       # (Bb, L, d_k)
        vh = v3[:, :, h * d_v:(h + 1) * d_v].astype(bf16)       # (Bb, L, d_v)

        # contract d_k directly -- no explicit K transpose
        s = jnp.einsum('bqd,bkd->bqk', qh, kh, preferred_element_type=f32)   # (Bb, L, L)
        s = s + rel_ref[h] + bias                               # relative bias + mask bias

        s = s - jnp.max(s, axis=-1, keepdims=True)
        e = jnp.exp(s)
        p = e * pl.reciprocal(jnp.sum(e, axis=-1, keepdims=True), approx=True)
        if attn_ref is not None:
            attn_ref[:, h, :, :] = p

        oh = jnp.einsum('bqk,bkd->bqd', p.astype(bf16), vh,
                        preferred_element_type=f32)             # (Bb, L, d_v)
        o_scratch[:, :, h * d_v:(h + 1) * d_v] = oh             # write in concat layout

    o = o_scratch[...].reshape(Bb * L, H * d_v)
    o = jnp.dot(o.astype(bf16), wo_ref[...], preferred_element_type=f32)     # (Bb*L, D)
    o = o + x                                                   # residual

    # LayerNorm(d_model, eps=1e-6)
    mu = jnp.mean(o, axis=-1, keepdims=True)
    var = jnp.mean((o - mu) ** 2, axis=-1, keepdims=True)
    o = (o - mu) * jax.lax.rsqrt(var + 1e-6) * ln1_g_ref[...] + ln1_b_ref[...]

    keep = keep_ref[...]               # (Bb*L, 1): 1.0 keep / 0.0 pad
    o = o * keep                       # masked_fill(pad_mask, 0.0)

    # ---- position-wise feed-forward ------------------------------------------
    h1 = jnp.dot(o.astype(bf16), w1_ref[...], preferred_element_type=f32) + b1_ref[...]
    h1 = jnp.maximum(h1, 0.0)                                   # ReLU
    y = jnp.dot(h1.astype(bf16), w2_ref[...], preferred_element_type=f32) + b2_ref[...]
    y = y + o                                                   # residual

    mu2 = jnp.mean(y, axis=-1, keepdims=True)
    var2 = jnp.mean((y - mu2) ** 2, axis=-1, keepdims=True)
    y = (y - mu2) * jax.lax.rsqrt(var2 + 1e-6) * ln2_g_ref[...] + ln2_b_ref[...]

    out_ref[...] = y * keep            # masked_fill(pad_mask, 0.0)


def encoder_layer(enc_input, slf_attn_mask, pad_mask, params, *,
                  n_head, d_k, d_v, return_attn=True, batch_block=None):
    B, L, D = enc_input.shape
    H = n_head
    f32, bf16 = jnp.float32, jnp.bfloat16

    # Pick how many batches to fold into one grid step (target >=128 rows per step).
    if batch_block is None:
        batch_block = B
        for cand in range(1, B + 1):
            if B % cand == 0 and cand * L >= 128:
                batch_block = cand
                break
    assert B % batch_block == 0, "batch_block must divide batch size"
    Bb = batch_block
    n_steps = B // Bb

    # Parameter prep (XLA side): fold scale into Wq, cast matmul weights to bf16.
    scale = 1.0 / math.sqrt(d_k)
    wq = (params["wq"].astype(f32) * scale).astype(bf16)
    wk = params["wk"].astype(bf16)
    wv = params["wv"].astype(bf16)
    wo = params["wo"].astype(bf16)
    w1 = params["w1"].astype(bf16)
    w2 = params["w2"].astype(bf16)
    rel = params["rel"].astype(f32)
    ln1_g, ln1_b = params["ln1_g"].astype(f32), params["ln1_b"].astype(f32)
    b1, b2 = params["b1"].astype(f32), params["b2"].astype(f32)
    ln2_g, ln2_b = params["ln2_g"].astype(f32), params["ln2_b"].astype(f32)

    # Pre-merge the integer masks into float operands.
    attn_bias = jnp.where(slf_attn_mask == 0, jnp.float32(-1e9), jnp.float32(0.0))   # (B, L, L)
    keep = jnp.where(pad_mask != 0, jnp.float32(0.0), jnp.float32(1.0)).reshape(B * L, 1)

    x2 = enc_input.astype(f32).reshape(B * L, D)   # batch folded into rows

    weight_args = (wq, wk, wv, wo, rel, ln1_g, ln1_b, w1, b1, w2, b2, ln2_g, ln2_b)

    def whole(arr):
        nd = arr.ndim
        return pl.BlockSpec(arr.shape, lambda b, _nd=nd: (0,) * _nd)

    in_specs = [
        pl.BlockSpec((Bb * L, D), lambda b: (b, 0)),       # enc_input rows
        pl.BlockSpec((Bb, L, L), lambda b: (b, 0, 0)),     # additive attention-mask bias
        pl.BlockSpec((Bb * L, 1), lambda b: (b, 0)),       # pad keep multiplier
    ] + [whole(w) for w in weight_args]

    out_specs = [pl.BlockSpec((Bb * L, D), lambda b: (b, 0))]
    out_shape = [jax.ShapeDtypeStruct((B * L, D), f32)]
    if return_attn:
        out_specs.append(pl.BlockSpec((Bb, H, L, L), lambda b: (b, 0, 0, 0)))
        out_shape.append(jax.ShapeDtypeStruct((B, H, L, L), f32))

    kernel = functools.partial(encoder_layer_kernel, n_head=H, d_k=d_k, d_v=d_v,
                               with_attn=return_attn)

    outs = pl.pallas_call(
        kernel,
        out_shape=tuple(out_shape),
        grid=(n_steps,),
        in_specs=in_specs,
        out_specs=tuple(out_specs),
        scratch_shapes=[pltpu.VMEM((Bb, L, H * d_v), f32)],
        compiler_params=pltpu.CompilerParams(
            dimension_semantics=("parallel",),
            vmem_limit_bytes=48 * 1024 * 1024,
        ),
    )(x2, attn_bias, keep, *weight_args)

    out2 = outs[0]
    enc_output = out2.reshape(B, L, D)
    if return_attn:
        return enc_output, outs[1]
    return enc_output


def encoder_layer_ref(enc_input, slf_attn_mask, pad_mask, params, *, n_head, d_k, d_v):
    """Pure-JAX (f32) reference of the same forward pass (for validation)."""
    B, L, D = enc_input.shape
    x = enc_input
    q = (x @ params["wq"]).reshape(B, L, n_head, d_k).transpose(0, 2, 1, 3)
    k = (x @ params["wk"]).reshape(B, L, n_head, d_k).transpose(0, 2, 1, 3)
    v = (x @ params["wv"]).reshape(B, L, n_head, d_v).transpose(0, 2, 1, 3)
    s = jnp.einsum("bhqd,bhkd->bhqk", q, k) / math.sqrt(d_k) + params["rel"][None]
    s = jnp.where(slf_attn_mask[:, None] == 0, -1e9, s)
    p = jax.nn.softmax(s, axis=-1)
    o = jnp.einsum("bhqk,bhkd->bhqd", p, v).transpose(0, 2, 1, 3).reshape(B, L, n_head * d_v)
    o = o @ params["wo"] + x
    o = (o - o.mean(-1, keepdims=True)) * jax.lax.rsqrt(o.var(-1, keepdims=True) + 1e-6)
    o = o * params["ln1_g"][0] + params["ln1_b"][0]
    o = jnp.where(pad_mask != 0, 0.0, o)
    h1 = jax.nn.relu(o @ params["w1"] + params["b1"][0])
    y = h1 @ params["w2"] + params["b2"][0] + o
    y = (y - y.mean(-1, keepdims=True)) * jax.lax.rsqrt(y.var(-1, keepdims=True) + 1e-6)
    y = y * params["ln2_g"][0] + params["ln2_b"][0]
    y = jnp.where(pad_mask != 0, 0.0, y)
    return y, p


if __name__ == "__main__":
    # small shapes consistent with the module's forward
    B, L, D = 2, 8, 32          # batch, len_q, d_model
    H, d_k, d_v = 4, 8, 8       # n_head, d_k, d_v
    d_inner = 64

    key = jax.random.PRNGKey(0)
    ks = jax.random.split(key, 12)
    f32 = jnp.float32

    params = {
        "wq": jax.random.normal(ks[0], (D, H * d_k), f32) * 0.1,
        "wk": jax.random.normal(ks[1], (D, H * d_k), f32) * 0.1,
        "wv": jax.random.normal(ks[2], (D, H * d_v), f32) * 0.1,
        "wo": jax.random.normal(ks[3], (H * d_v, D), f32) * 0.1,
        "rel": jax.random.normal(ks[4], (H, L, L), f32) * 0.1,   # relative position bias
        "ln1_g": jnp.ones((1, D), f32),
        "ln1_b": jnp.zeros((1, D), f32),
        "w1": jax.random.normal(ks[5], (D, d_inner), f32) * 0.1,
        "b1": jax.random.normal(ks[6], (1, d_inner), f32) * 0.1,
        "w2": jax.random.normal(ks[7], (d_inner, D), f32) * 0.1,
        "b2": jax.random.normal(ks[8], (1, D), f32) * 0.1,
        "ln2_g": jnp.ones((1, D), f32),
        "ln2_b": jnp.zeros((1, D), f32),
    }

    enc_input = jax.random.normal(ks[9], (B, L, D), f32)
    # attention mask: 1 = attend, 0 = masked (mask the last key position of batch 1)
    slf_attn_mask = jnp.ones((B, L, L), jnp.int32).at[1, :, -1].set(0)
    # pad mask: nonzero = zero out output position (pad the last query position of batch 1)
    pad_mask = jnp.zeros((B, L, 1), jnp.int32).at[1, -1, 0].set(1)

    out, attn = encoder_layer(enc_input, slf_attn_mask, pad_mask, params,
                              n_head=H, d_k=d_k, d_v=d_v)
    jax.block_until_ready((out, attn))

    ref_out, ref_attn = encoder_layer_ref(enc_input, slf_attn_mask, pad_mask, params,
                                          n_head=H, d_k=d_k, d_v=d_v)
    # bf16 matmul path -> slightly looser tolerance than a pure-f32 kernel
    assert jnp.allclose(out, ref_out, atol=3e-2, rtol=3e-2), "enc_output mismatch"
    assert jnp.allclose(attn, ref_attn, atol=2e-2, rtol=2e-2), "attention mismatch"

    print("KERNEL_OK")
</pallas_src>

<mosaic_0001>
module attributes {stable_mosaic.version = 11 : i64} {
  func.func @encoder_layer_kernel(%arg0: i32, %arg1: memref<16x32xf32, #tpu.memory_space<vmem>>, %arg2: memref<2x8x8xf32, #tpu.memory_space<vmem>>, %arg3: memref<16x1xf32, #tpu.memory_space<vmem>>, %arg4: memref<32x32xbf16, #tpu.memory_space<vmem>>, %arg5: memref<32x32xbf16, #tpu.memory_space<vmem>>, %arg6: memref<32x32xbf16, #tpu.memory_space<vmem>>, %arg7: memref<32x32xbf16, #tpu.memory_space<vmem>>, %arg8: memref<4x8x8xf32, #tpu.memory_space<vmem>>, %arg9: memref<1x32xf32, #tpu.memory_space<vmem>>, %arg10: memref<1x32xf32, #tpu.memory_space<vmem>>, %arg11: memref<32x64xbf16, #tpu.memory_space<vmem>>, %arg12: memref<1x64xf32, #tpu.memory_space<vmem>>, %arg13: memref<64x32xbf16, #tpu.memory_space<vmem>>, %arg14: memref<1x32xf32, #tpu.memory_space<vmem>>, %arg15: memref<1x32xf32, #tpu.memory_space<vmem>>, %arg16: memref<1x32xf32, #tpu.memory_space<vmem>>, %arg17: memref<16x32xf32, #tpu.memory_space<vmem>>, %arg18: memref<2x4x8x8xf32, #tpu.memory_space<vmem>>, %arg19: memref<2x8x32xf32, #tpu.memory_space<vmem>>) attributes {dimension_semantics = [#tpu.dimension_semantics<parallel>], iteration_bounds = array<i64: 1>, scalar_prefetch = 0 : i64, scratch_operands = 1 : i64, tpu.core_type = #tpu.core_type<tc>, window_params = [{transform_indices = @transform_0, window_bounds = array<i64: 16, 32>}, {transform_indices = @transform_1, window_bounds = array<i64: 2, 8, 8>}, {transform_indices = @transform_2, window_bounds = array<i64: 16, 1>}, {pipeline_mode = #tpu.pipeline_mode<synchronous>, transform_indices = @transform_3, window_bounds = array<i64: 32, 32>}, {pipeline_mode = #tpu.pipeline_mode<synchronous>, transform_indices = @transform_4, window_bounds = array<i64: 32, 32>}, {pipeline_mode = #tpu.pipeline_mode<synchronous>, transform_indices = @transform_5, window_bounds = array<i64: 32, 32>}, {pipeline_mode = #tpu.pipeline_mode<synchronous>, transform_indices = @transform_6, window_bounds = array<i64: 32, 32>}, {pipeline_mode = #tpu.pipeline_mode<synchronous>, transform_indices = @transform_7, window_bounds = array<i64: 4, 8, 8>}, {pipeline_mode = #tpu.pipeline_mode<synchronous>, transform_indices = @transform_8, window_bounds = array<i64: 1, 32>}, {pipeline_mode = #tpu.pipeline_mode<synchronous>, transform_indices = @transform_9, window_bounds = array<i64: 1, 32>}, {pipeline_mode = #tpu.pipeline_mode<synchronous>, transform_indices = @transform_10, window_bounds = array<i64: 32, 64>}, {pipeline_mode = #tpu.pipeline_mode<synchronous>, transform_indices = @transform_11, window_bounds = array<i64: 1, 64>}, {pipeline_mode = #tpu.pipeline_mode<synchronous>, transform_indices = @transform_12, window_bounds = array<i64: 64, 32>}, {pipeline_mode = #tpu.pipeline_mode<synchronous>, transform_indices = @transform_13, window_bounds = array<i64: 1, 32>}, {pipeline_mode = #tpu.pipeline_mode<synchronous>, transform_indices = @transform_14, window_bounds = array<i64: 1, 32>}, {pipeline_mode = #tpu.pipeline_mode<synchronous>, transform_indices = @transform_15, window_bounds = array<i64: 1, 32>}, {transform_indices = @transform_16, window_bounds = array<i64: 16, 32>}, {transform_indices = @transform_17, window_bounds = array<i64: 2, 4, 8, 8>}]} {
    %c0 = arith.constant 0 : index
    %c0_0 = arith.constant 0 : index
    %0 = vector.load %arg1[%c0, %c0_0] : memref<16x32xf32, #tpu.memory_space<vmem>>, vector<16x32xf32>
    %1 = arith.truncf %0 : vector<16x32xf32> to vector<16x32xbf16>
    %c0_1 = arith.constant 0 : index
    %c0_2 = arith.constant 0 : index
    %2 = vector.load %arg4[%c0_1, %c0_2] : memref<32x32xbf16, #tpu.memory_space<vmem>>, vector<32x32xbf16>
    %cst = arith.constant dense<0.000000e+00> : vector<16x32xf32>
    %3 = tpu.matmul %1, %2, %cst {dimension_numbers = #tpu.dot_dimension_numbers<[1], [0], [0], [1], [0, 0, 1, 1], [], []>} : vector<16x32xbf16>, vector<32x32xbf16>, vector<16x32xf32> -> vector<16x32xf32>
    %c0_3 = arith.constant 0 : index
    %c0_4 = arith.constant 0 : index
    %4 = vector.load %arg5[%c0_3, %c0_4] : memref<32x32xbf16, #tpu.memory_space<vmem>>, vector<32x32xbf16>
    %cst_5 = arith.constant dense<0.000000e+00> : vector<16x32xf32>
    %5 = tpu.matmul %1, %4, %cst_5 {dimension_numbers = #tpu.dot_dimension_numbers<[1], [0], [0], [1], [0, 0, 1, 1], [], []>} : vector<16x32xbf16>, vector<32x32xbf16>, vector<16x32xf32> -> vector<16x32xf32>
    %c0_6 = arith.constant 0 : index
    %c0_7 = arith.constant 0 : index
    %6 = vector.load %arg6[%c0_6, %c0_7] : memref<32x32xbf16, #tpu.memory_space<vmem>>, vector<32x32xbf16>
    %cst_8 = arith.constant dense<0.000000e+00> : vector<16x32xf32>
    %7 = tpu.matmul %1, %6, %cst_8 {dimension_numbers = #tpu.dot_dimension_numbers<[1], [0], [0], [1], [0, 0, 1, 1], [], []>} : vector<16x32xbf16>, vector<32x32xbf16>, vector<16x32xf32> -> vector<16x32xf32>
    %8 = vector.shape_cast %3 : vector<16x32xf32> to vector<2x8x32xf32>
    %9 = vector.shape_cast %5 : vector<16x32xf32> to vector<2x8x32xf32>
    %10 = vector.shape_cast %7 : vector<16x32xf32> to vector<2x8x32xf32>
    %c0_9 = arith.constant 0 : index
    %c0_10 = arith.constant 0 : index
    %c0_11 = arith.constant 0 : index
    %11 = vector.load %arg2[%c0_9, %c0_10, %c0_11] : memref<2x8x8xf32, #tpu.memory_space<vmem>>, vector<2x8x8xf32>
    %12 = vector.extract_strided_slice %8 {offsets = [0, 0, 0], sizes = [2, 8, 8], strides = [1, 1, 1]} : vector<2x8x32xf32> to vector<2x8x8xf32>
    %13 = arith.truncf %12 : vector<2x8x8xf32> to vector<2x8x8xbf16>
    %14 = vector.extract_strided_slice %9 {offsets = [0, 0, 0], sizes = [2, 8, 8], strides = [1, 1, 1]} : vector<2x8x32xf32> to vector<2x8x8xf32>
    %15 = arith.truncf %14 : vector<2x8x8xf32> to vector<2x8x8xbf16>
    %16 = vector.extract_strided_slice %10 {offsets = [0, 0, 0], sizes = [2, 8, 8], strides = [1, 1, 1]} : vector<2x8x32xf32> to vector<2x8x8xf32>
    %17 = arith.truncf %16 : vector<2x8x8xf32> to vector<2x8x8xbf16>
    "tpu.trace_start"() <{level = 10 : i32, message = "bqd,bkd->bqk"}> : () -> ()
    %cst_12 = arith.constant dense<0.000000e+00> : vector<2x8x8xf32>
    %18 = tpu.matmul %13, %15, %cst_12 {dimension_numbers = #tpu.dot_dimension_numbers<[2], [2], [1], [1], [0, 0, 0, 1, 1, 1], [0], [0]>} : vector<2x8x8xbf16>, vector<2x8x8xbf16>, vector<2x8x8xf32> -> vector<2x8x8xf32>
    "tpu.trace_stop"() : () -> ()
    %c0_13 = arith.constant 0 : index
    %c0_14 = arith.constant 0 : index
    %c0_15 = arith.constant 0 : index
    %19 = vector.load %arg8[%c0_13, %c0_14, %c0_15] : memref<4x8x8xf32, #tpu.memory_space<vmem>>, vector<1x8x8xf32>
    %20 = vector.shape_cast %19 : vector<1x8x8xf32> to vector<8x8xf32>
    %21 = vector.shape_cast %20 : vector<8x8xf32> to vector<1x8x8xf32>
    %22 = vector.broadcast %21 : vector<1x8x8xf32> to vector<2x8x8xf32>
    %23 = arith.addf %18, %22 : vector<2x8x8xf32>
    %24 = arith.addf %23, %11 : vector<2x8x8xf32>
    %cst_16 = arith.constant dense<0xFF800000> : vector<2x8xf32>
    %25 = vector.multi_reduction <maximumf>, %24, %cst_16 [2] : vector<2x8x8xf32> to vector<2x8xf32>
    %26 = vector.shape_cast %25 : vector<2x8xf32> to vector<2x8x1xf32>
    %27 = vector.broadcast %26 : vector<2x8x1xf32> to vector<2x8x8xf32>
    %28 = arith.subf %24, %27 : vector<2x8x8xf32>
    %29 = math.exp %28 : vector<2x8x8xf32>
    %cst_17 = arith.constant dense<0.000000e+00> : vector<2x8xf32>
    %30 = vector.multi_reduction <add>, %29, %cst_17 [2] : vector<2x8x8xf32> to vector<2x8xf32>
    %31 = vector.shape_cast %30 : vector<2x8xf32> to vector<2x8x1xf32>
    %32 = tpu.reciprocal %31 {approx = true} : vector<2x8x1xf32> -> vector<2x8x1xf32>
    %33 = vector.broadcast %32 : vector<2x8x1xf32> to vector<2x8x8xf32>
    %34 = arith.mulf %29, %33 : vector<2x8x8xf32>
    %c0_18 = arith.constant 0 : index
    %c0_19 = arith.constant 0 : index
    %c0_20 = arith.constant 0 : index
    %c0_21 = arith.constant 0 : index
    %35 = vector.load %arg18[%c0_18, %c0_19, %c0_20, %c0_21] : memref<2x4x8x8xf32, #tpu.memory_space<vmem>>, vector<2x1x8x8xf32>
    %36 = vector.shape_cast %35 : vector<2x1x8x8xf32> to vector<2x8x8xf32>
    %37 = vector.shape_cast %34 : vector<2x8x8xf32> to vector<2x1x8x8xf32>
    tpu.vector_store %arg18[%c0_18, %c0_19, %c0_20, %c0_21], %37 {strides = array<i32>} : memref<2x4x8x8xf32, #tpu.memory_space<vmem>>, vector<2x1x8x8xf32>,
    %38 = arith.truncf %34 : vector<2x8x8xf32> to vector<2x8x8xbf16>
    "tpu.trace_start"() <{level = 10 : i32, message = "bqk,bkd->bqd"}> : () -> ()
    %cst_22 = arith.constant dense<0.000000e+00> : vector<2x8x8xf32>
    %39 = tpu.matmul %38, %17, %cst_22 {dimension_numbers = #tpu.dot_dimension_numbers<[2], [1], [1], [2], [0, 0, 0, 1, 1, 2], [0], [0]>} : vector<2x8x8xbf16>, vector<2x8x8xbf16>, vector<2x8x8xf32> -> vector<2x8x8xf32>
    "tpu.trace_stop"() : () -> ()
    %c0_23 = arith.constant 0 : index
    %c0_24 = arith.constant 0 : index
    %c0_25 = arith.constant 0 : index
    %40 = vector.load %arg19[%c0_23, %c0_24, %c0_25] : memref<2x8x32xf32, #tpu.memory_space<vmem>>, vector<2x8x8xf32>
    tpu.vector_store %arg19[%c0_23, %c0_24, %c0_25], %39 {strides = array<i32>} : memref<2x8x32xf32, #tpu.memory_space<vmem>>, vector<2x8x8xf32>,
    %41 = vector.extract_strided_slice %8 {offsets = [0, 0, 8], sizes = [2, 8, 8], strides = [1, 1, 1]} : vector<2x8x32xf32> to vector<2x8x8xf32>
    %42 = arith.truncf %41 : vector<2x8x8xf32> to vector<2x8x8xbf16>
    %43 = vector.extract_strided_slice %9 {offsets = [0, 0, 8], sizes = [2, 8, 8], strides = [1, 1, 1]} : vector<2x8x32xf32> to vector<2x8x8xf32>
    %44 = arith.truncf %43 : vector<2x8x8xf32> to vector<2x8x8xbf16>
    %45 = vector.extract_strided_slice %10 {offsets = [0, 0, 8], sizes = [2, 8, 8], strides = [1, 1, 1]} : vector<2x8x32xf32> to vector<2x8x8xf32>
    %46 = arith.truncf %45 : vector<2x8x8xf32> to vector<2x8x8xbf16>
    "tpu.trace_start"() <{level = 10 : i32, message = "bqd,bkd->bqk"}> : () -> ()
    %cst_26 = arith.constant dense<0.000000e+00> : vector<2x8x8xf32>
    %47 = tpu.matmul %42, %44, %cst_26 {dimension_numbers = #tpu.dot_dimension_numbers<[2], [2], [1], [1], [0, 0, 0, 1, 1, 1], [0], [0]>} : vector<2x8x8xbf16>, vector<2x8x8xbf16>, vector<2x8x8xf32> -> vector<2x8x8xf32>
    "tpu.trace_stop"() : () -> ()
    %c1 = arith.constant 1 : index
    %c0_27 = arith.constant 0 : index
    %c0_28 = arith.constant 0 : index
    %48 = vector.load %arg8[%c1, %c0_27, %c0_28] : memref<4x8x8xf32, #tpu.memory_space<vmem>>, vector<1x8x8xf32>
    %49 = vector.shape_cast %48 : vector<1x8x8xf32> to vector<8x8xf32>
    %50 = vector.shape_cast %49 : vector<8x8xf32> to vector<1x8x8xf32>
    %51 = vector.broadcast %50 : vector<1x8x8xf32> to vector<2x8x8xf32>
    %52 = arith.addf %47, %51 : vector<2x8x8xf32>
    %53 = arith.addf %52, %11 : vector<2x8x8xf32>
    %cst_29 = arith.constant dense<0xFF800000> : vector<2x8xf32>
    %54 = vector.multi_reduction <maximumf>, %53, %cst_29 [2] : vector<2x8x8xf32> to vector<2x8xf32>
    %55 = vector.shape_cast %54 : vector<2x8xf32> to vector<2x8x1xf32>
    %56 = vector.broadcast %55 : vector<2x8x1xf32> to vector<2x8x8xf32>
    %57 = arith.subf %53, %56 : vector<2x8x8xf32>
    %58 = math.exp %57 : vector<2x8x8xf32>
    %cst_30 = arith.constant dense<0.000000e+00> : vector<2x8xf32>
    %59 = vector.multi_reduction <add>, %58, %cst_30 [2] : vector<2x8x8xf32> to vector<2x8xf32>
    %60 = vector.shape_cast %59 : vector<2x8xf32> to vector<2x8x1xf32>
    %61 = tpu.reciprocal %60 {approx = true} : vector<2x8x1xf32> -> vector<2x8x1xf32>
    %62 = vector.broadcast %61 : vector<2x8x1xf32> to vector<2x8x8xf32>
    %63 = arith.mulf %58, %62 : vector<2x8x8xf32>
    %c0_31 = arith.constant 0 : index
    %c1_32 = arith.constant 1 : index
    %c0_33 = arith.constant 0 : index
    %c0_34 = arith.constant 0 : index
    %64 = vector.load %arg18[%c0_31, %c1_32, %c0_33, %c0_34] : memref<2x4x8x8xf32, #tpu.memory_space<vmem>>, vector<2x1x8x8xf32>
    %65 = vector.shape_cast %64 : vector<2x1x8x8xf32> to vector<2x8x8xf32>
    %66 = vector.shape_cast %63 : vector<2x8x8xf32> to vector<2x1x8x8xf32>
    tpu.vector_store %arg18[%c0_31, %c1_32, %c0_33, %c0_34], %66 {strides = array<i32>} : memref<2x4x8x8xf32, #tpu.memory_space<vmem>>, vector<2x1x8x8xf32>,
    %67 = arith.truncf %63 : vector<2x8x8xf32> to vector<2x8x8xbf16>
    "tpu.trace_start"() <{level = 10 : i32, message = "bqk,bkd->bqd"}> : () -> ()
    %cst_35 = arith.constant dense<0.000000e+00> : vector<2x8x8xf32>
    %68 = tpu.matmul %67, %46, %cst_35 {dimension_numbers = #tpu.dot_dimension_numbers<[2], [1], [1], [2], [0, 0, 0, 1, 1, 2], [0], [0]>} : vector<2x8x8xbf16>, vector<2x8x8xbf16>, vector<2x8x8xf32> -> vector<2x8x8xf32>
    "tpu.trace_stop"() : () -> ()
    %c0_36 = arith.constant 0 : index
    %c0_37 = arith.constant 0 : index
    %c8 = arith.constant 8 : index
    %69 = vector.load %arg19[%c0_36, %c0_37, %c8] : memref<2x8x32xf32, #tpu.memory_space<vmem>>, vector<2x8x8xf32>
    tpu.vector_store %arg19[%c0_36, %c0_37, %c8], %68 {strides = array<i32>} : memref<2x8x32xf32, #tpu.memory_space<vmem>>, vector<2x8x8xf32>,
    %70 = vector.extract_strided_slice %8 {offsets = [0, 0, 16], sizes = [2, 8, 8], strides = [1, 1, 1]} : vector<2x8x32xf32> to vector<2x8x8xf32>
    %71 = arith.truncf %70 : vector<2x8x8xf32> to vector<2x8x8xbf16>
    %72 = vector.extract_strided_slice %9 {offsets = [0, 0, 16], sizes = [2, 8, 8], strides = [1, 1, 1]} : vector<2x8x32xf32> to vector<2x8x8xf32>
    %73 = arith.truncf %72 : vector<2x8x8xf32> to vector<2x8x8xbf16>
    %74 = vector.extract_strided_slice %10 {offsets = [0, 0, 16], sizes = [2, 8, 8], strides = [1, 1, 1]} : vector<2x8x32xf32> to vector<2x8x8xf32>
    %75 = arith.truncf %74 : vector<2x8x8xf32> to vector<2x8x8xbf16>
    "tpu.trace_start"() <{level = 10 : i32, message = "bqd,bkd->bqk"}> : () -> ()
    %cst_38 = arith.constant dense<0.000000e+00> : vector<2x8x8xf32>
    %76 = tpu.matmul %71, %73, %cst_38 {dimension_numbers = #tpu.dot_dimension_numbers<[2], [2], [1], [1], [0, 0, 0, 1, 1, 1], [0], [0]>} : vector<2x8x8xbf16>, vector<2x8x8xbf16>, vector<2x8x8xf32> -> vector<2x8x8xf32>
    "tpu.trace_stop"() : () -> ()
    %c2 = arith.constant 2 : index
    %c0_39 = arith.constant 0 : index
    %c0_40 = arith.constant 0 : index
    %77 = vector.load %arg8[%c2, %c0_39, %c0_40] : memref<4x8x8xf32, #tpu.memory_space<vmem>>, vector<1x8x8xf32>
    %78 = vector.shape_cast %77 : vector<1x8x8xf32> to vector<8x8xf32>
    %79 = vector.shape_cast %78 : vector<8x8xf32> to vector<1x8x8xf32>
    %80 = vector.broadcast %79 : vector<1x8x8xf32> to vector<2x8x8xf32>
    %81 = arith.addf %76, %80 : vector<2x8x8xf32>
    %82 = arith.addf %81, %11 : vector<2x8x8xf32>
    %cst_41 = arith.constant dense<0xFF800000> : vector<2x8xf32>
    %83 = vector.multi_reduction <maximumf>, %82, %cst_41 [2] : vector<2x8x8xf32> to vector<2x8xf32>
    %84 = vector.shape_cast %83 : vector<2x8xf32> to vector<2x8x1xf32>
    %85 = vector.broadcast %84 : vector<2x8x1xf32> to vector<2x8x8xf32>
    %86 = arith.subf %82, %85 : vector<2x8x8xf32>
    %87 = math.exp %86 : vector<2x8x8xf32>
    %cst_42 = arith.constant dense<0.000000e+00> : vector<2x8xf32>
    %88 = vector.multi_reduction <add>, %87, %cst_42 [2] : vector<2x8x8xf32> to vector<2x8xf32>
    %89 = vector.shape_cast %88 : vector<2x8xf32> to vector<2x8x1xf32>
    %90 = tpu.reciprocal %89 {approx = true} : vector<2x8x1xf32> -> vector<2x8x1xf32>
    %91 = vector.broadcast %90 : vector<2x8x1xf32> to vector<2x8x8xf32>
    %92 = arith.mulf %87, %91 : vector<2x8x8xf32>
    %c0_43 = arith.constant 0 : index
    %c2_44 = arith.constant 2 : index
    %c0_45 = arith.constant 0 : index
    %c0_46 = arith.constant 0 : index
    %93 = vector.load %arg18[%c0_43, %c2_44, %c0_45, %c0_46] : memref<2x4x8x8xf32, #tpu.memory_space<vmem>>, vector<2x1x8x8xf32>
    %94 = vector.shape_cast %93 : vector<2x1x8x8xf32> to vector<2x8x8xf32>
    %95 = vector.shape_cast %92 : vector<2x8x8xf32> to vector<2x1x8x8xf32>
    tpu.vector_store %arg18[%c0_43, %c2_44, %c0_45, %c0_46], %95 {strides = array<i32>} : memref<2x4x8x8xf32, #tpu.memory_space<vmem>>, vector<2x1x8x8xf32>,
    %96 = arith.truncf %92 : vector<2x8x8xf32> to vector<2x8x8xbf16>
    "tpu.trace_start"() <{level = 10 : i32, message = "bqk,bkd->bqd"}> : () -> ()
    %cst_47 = arith.constant dense<0.000000e+00> : vector<2x8x8xf32>
    %97 = tpu.matmul %96, %75, %cst_47 {dimension_numbers = #tpu.dot_dimension_numbers<[2], [1], [1], [2], [0, 0, 0, 1, 1, 2], [0], [0]>} : vector<2x8x8xbf16>, vector<2x8x8xbf16>, vector<2x8x8xf32> -> vector<2x8x8xf32>
    "tpu.trace_stop"() : () -> ()
    %c0_48 = arith.constant 0 : index
    %c0_49 = arith.constant 0 : index
    %c16 = arith.constant 16 : index
    %98 = vector.load %arg19[%c0_48, %c0_49, %c16] : memref<2x8x32xf32, #tpu.memory_space<vmem>>, vector<2x8x8xf32>
    tpu.vector_store %arg19[%c0_48, %c0_49, %c16], %97 {strides = array<i32>} : memref<2x8x32xf32, #tpu.memory_space<vmem>>, vector<2x8x8xf32>,
    %99 = vector.extract_strided_slice %8 {offsets = [0, 0, 24], sizes = [2, 8, 8], strides = [1, 1, 1]} : vector<2x8x32xf32> to vector<2x8x8xf32>
    %100 = arith.truncf %99 : vector<2x8x8xf32> to vector<2x8x8xbf16>
    %101 = vector.extract_strided_slice %9 {offsets = [0, 0, 24], sizes = [2, 8, 8], strides = [1, 1, 1]} : vector<2x8x32xf32> to vector<2x8x8xf32>
    %102 = arith.truncf %101 : vector<2x8x8xf32> to vector<2x8x8xbf16>
    %103 = vector.extract_strided_slice %10 {offsets = [0, 0, 24], sizes = [2, 8, 8], strides = [1, 1, 1]} : vector<2x8x32xf32> to vector<2x8x8xf32>
    %104 = arith.truncf %103 : vector<2x8x8xf32> to vector<2x8x8xbf16>
    "tpu.trace_start"() <{level = 10 : i32, message = "bqd,bkd->bqk"}> : () -> ()
    %cst_50 = arith.constant dense<0.000000e+00> : vector<2x8x8xf32>
    %105 = tpu.matmul %100, %102, %cst_50 {dimension_numbers = #tpu.dot_dimension_numbers<[2], [2], [1], [1], [0, 0, 0, 1, 1, 1], [0], [0]>} : vector<2x8x8xbf16>, vector<2x8x8xbf16>, vector<2x8x8xf32> -> vector<2x8x8xf32>
    "tpu.trace_stop"() : () -> ()
    %c3 = arith.constant 3 : index
    %c0_51 = arith.constant 0 : index
    %c0_52 = arith.constant 0 : index
    %106 = vector.load %arg8[%c3, %c0_51, %c0_52] : memref<4x8x8xf32, #tpu.memory_space<vmem>>, vector<1x8x8xf32>
    %107 = vector.shape_cast %106 : vector<1x8x8xf32> to vector<8x8xf32>
    %108 = vector.shape_cast %107 : vector<8x8xf32> to vector<1x8x8xf32>
    %109 = vector.broadcast %108 : vector<1x8x8xf32> to vector<2x8x8xf32>
    %110 = arith.addf %105, %109 : vector<2x8x8xf32>
    %111 = arith.addf %110, %11 : vector<2x8x8xf32>
    %cst_53 = arith.constant dense<0xFF800000> : vector<2x8xf32>
    %112 = vector.multi_reduction <maximumf>, %111, %cst_53 [2] : vector<2x8x8xf32> to vector<2x8xf32>
    %113 = vector.shape_cast %112 : vector<2x8xf32> to vector<2x8x1xf32>
    %114 = vector.broadcast %113 : vector<2x8x1xf32> to vector<2x8x8xf32>
    %115 = arith.subf %111, %114 : vector<2x8x8xf32>
    %116 = math.exp %115 : vector<2x8x8xf32>
    %cst_54 = arith.constant dense<0.000000e+00> : vector<2x8xf32>
    %117 = vector.multi_reduction <add>, %116, %cst_54 [2] : vector<2x8x8xf32> to vector<2x8xf32>
    %118 = vector.shape_cast %117 : vector<2x8xf32> to vector<2x8x1xf32>
    %119 = tpu.reciprocal %118 {approx = true} : vector<2x8x1xf32> -> vector<2x8x1xf32>
    %120 = vector.broadcast %119 : vector<2x8x1xf32> to vector<2x8x8xf32>
    %121 = arith.mulf %116, %120 : vector<2x8x8xf32>
    %c0_55 = arith.constant 0 : index
    %c3_56 = arith.constant 3 : index
    %c0_57 = arith.constant 0 : index
    %c0_58 = arith.constant 0 : index
    %122 = vector.load %arg18[%c0_55, %c3_56, %c0_57, %c0_58] : memref<2x4x8x8xf32, #tpu.memory_space<vmem>>, vector<2x1x8x8xf32>
    %123 = vector.shape_cast %122 : vector<2x1x8x8xf32> to vector<2x8x8xf32>
    %124 = vector.shape_cast %121 : vector<2x8x8xf32> to vector<2x1x8x8xf32>
    tpu.vector_store %arg18[%c0_55, %c3_56, %c0_57, %c0_58], %124 {strides = array<i32>} : memref<2x4x8x8xf32, #tpu.memory_space<vmem>>, vector<2x1x8x8xf32>,
    %125 = arith.truncf %121 : vector<2x8x8xf32> to vector<2x8x8xbf16>
    "tpu.trace_start"() <{level = 10 : i32, message = "bqk,bkd->bqd"}> : () -> ()
    %cst_59 = arith.constant dense<0.000000e+00> : vector<2x8x8xf32>
    %126 = tpu.matmul %125, %104, %cst_59 {dimension_numbers = #tpu.dot_dimension_numbers<[2], [1], [1], [2], [0, 0, 0, 1, 1, 2], [0], [0]>} : vector<2x8x8xbf16>, vector<2x8x8xbf16>, vector<2x8x8xf32> -> vector<2x8x8xf32>
    "tpu.trace_stop"() : () -> ()
    %c0_60 = arith.constant 0 : index
    %c0_61 = arith.constant 0 : index
    %c24 = arith.constant 24 : index
    %127 = vector.load %arg19[%c0_60, %c0_61, %c24] : memref<2x8x32xf32, #tpu.memory_space<vmem>>, vector<2x8x8xf32>
    tpu.vector_store %arg19[%c0_60, %c0_61, %c24], %126 {strides = array<i32>} : memref<2x8x32xf32, #tpu.memory_space<vmem>>, vector<2x8x8xf32>,
    %c0_62 = arith.constant 0 : index
    %c0_63 = arith.constant 0 : index
    %c0_64 = arith.constant 0 : index
    %128 = vector.load %arg19[%c0_62, %c0_63, %c0_64] : memref<2x8x32xf32, #tpu.memory_space<vmem>>, vector<2x8x32xf32>
    %129 = vector.shape_cast %128 : vector<2x8x32xf32> to vector<16x32xf32>
    %130 = arith.truncf %129 : vector<16x32xf32> to vector<16x32xbf16>
    %c0_65 = arith.constant 0 : index
    %c0_66 = arith.constant 0 : index
    %131 = vector.load %arg7[%c0_65, %c0_66] : memref<32x32xbf16, #tpu.memory_space<vmem>>, vector<32x32xbf16>
    %cst_67 = arith.constant dense<0.000000e+00> : vector<16x32xf32>
    %132 = tpu.matmul %130, %131, %cst_67 {dimension_numbers = #tpu.dot_dimension_numbers<[1], [0], [0], [1], [0, 0, 1, 1], [], []>} : vector<16x32xbf16>, vector<32x32xbf16>, vector<16x32xf32> -> vector<16x32xf32>
    %133 = arith.addf %132, %0 : vector<16x32xf32>
    %cst_68 = arith.constant dense<0.000000e+00> : vector<16xf32>
    %134 = vector.multi_reduction <add>, %133, %cst_68 [1] : vector<16x32xf32> to vector<16xf32>
    %135 = vector.shape_cast %134 : vector<16xf32> to vector<16x1xf32>
    %cst_69 = arith.constant 3.200000e+01 : f32
    %136 = vector.broadcast %cst_69 : f32 to vector<16x1xf32>
    %137 = arith.divf %135, %136 : vector<16x1xf32>
    %138 = vector.broadcast %137 : vector<16x1xf32> to vector<16x32xf32>
    %139 = arith.subf %133, %138 : vector<16x32xf32>
    %140 = arith.mulf %139, %139 : vector<16x32xf32>
    %cst_70 = arith.constant dense<0.000000e+00> : vector<16xf32>
    %141 = vector.multi_reduction <add>, %140, %cst_70 [1] : vector<16x32xf32> to vector<16xf32>
    %142 = vector.shape_cast %141 : vector<16xf32> to vector<16x1xf32>
    %cst_71 = arith.constant 3.200000e+01 : f32
    %143 = vector.broadcast %cst_71 : f32 to vector<16x1xf32>
    %144 = arith.divf %142, %143 : vector<16x1xf32>
    %145 = vector.broadcast %137 : vector<16x1xf32> to vector<16x32xf32>
    %146 = arith.subf %133, %145 : vector<16x32xf32>
    %cst_72 = arith.constant 9.99999997E-7 : f32
    %147 = vector.broadcast %cst_72 : f32 to vector<16x1xf32>
    %148 = arith.addf %144, %147 : vector<16x1xf32>
    %149 = math.rsqrt %148 : vector<16x1xf32>
    %150 = vector.broadcast %149 : vector<16x1xf32> to vector<16x32xf32>
    %151 = arith.mulf %146, %150 : vector<16x32xf32>
    %c0_73 = arith.constant 0 : index
    %c0_74 = arith.constant 0 : index
    %152 = vector.load %arg9[%c0_73, %c0_74] : memref<1x32xf32, #tpu.memory_space<vmem>>, vector<1x32xf32>
    %153 = vector.broadcast %152 : vector<1x32xf32> to vector<16x32xf32>
    %154 = arith.mulf %151, %153 : vector<16x32xf32>
    %c0_75 = arith.constant 0 : index
    %c0_76 = arith.constant 0 : index
    %155 = vector.load %arg10[%c0_75, %c0_76] : memref<1x32xf32, #tpu.memory_space<vmem>>, vector<1x32xf32>
    %156 = vector.broadcast %155 : vector<1x32xf32> to vector<16x32xf32>
    %157 = arith.addf %154, %156 : vector<16x32xf32>
    %c0_77 = arith.constant 0 : index
    %c0_78 = arith.constant 0 : index
    %158 = vector.load %arg3[%c0_77, %c0_78] : memref<16x1xf32, #tpu.memory_space<vmem>>, vector<16x1xf32>
    %159 = vector.broadcast %158 : vector<16x1xf32> to vector<16x32xf32>
    %160 = arith.mulf %157, %159 : vector<16x32xf32>
    %161 = arith.truncf %160 : vector<16x32xf32> to vector<16x32xbf16>
    %c0_79 = arith.constant 0 : index
    %c0_80 = arith.constant 0 : index
    %162 = vector.load %arg11[%c0_79, %c0_80] : memref<32x64xbf16, #tpu.memory_space<vmem>>, vector<32x64xbf16>
    %cst_81 = arith.constant dense<0.000000e+00> : vector<16x64xf32>
    %163 = tpu.matmul %161, %162, %cst_81 {dimension_numbers = #tpu.dot_dimension_numbers<[1], [0], [0], [1], [0, 0, 1, 1], [], []>} : vector<16x32xbf16>, vector<32x64xbf16>, vector<16x64xf32> -> vector<16x64xf32>
    %c0_82 = arith.constant 0 : index
    %c0_83 = arith.constant 0 : index
    %164 = vector.load %arg12[%c0_82, %c0_83] : memref<1x64xf32, #tpu.memory_space<vmem>>, vector<1x64xf32>
    %165 = vector.broadcast %164 : vector<1x64xf32> to vector<16x64xf32>
    %166 = arith.addf %163, %165 : vector<16x64xf32>
    %cst_84 = arith.constant 0.000000e+00 : f32
    %167 = vector.broadcast %cst_84 : f32 to vector<16x64xf32>
    %168 = arith.maximumf %166, %167 : vector<16x64xf32>
    %169 = arith.truncf %168 : vector<16x64xf32> to vector<16x64xbf16>
    %c0_85 = arith.constant 0 : index
    %c0_86 = arith.constant 0 : index
    %170 = vector.load %arg13[%c0_85, %c0_86] : memref<64x32xbf16, #tpu.memory_space<vmem>>, vector<64x32xbf16>
    %cst_87 = arith.constant dense<0.000000e+00> : vector<16x32xf32>
    %171 = tpu.matmul %169, %170, %cst_87 {dimension_numbers = #tpu.dot_dimension_numbers<[1], [0], [0], [1], [0, 0, 1, 1], [], []>} : vector<16x64xbf16>, vector<64x32xbf16>, vector<16x32xf32> -> vector<16x32xf32>
    %c0_88 = arith.constant 0 : index
    %c0_89 = arith.constant 0 : index
    %172 = vector.load %arg14[%c0_88, %c0_89] : memref<1x32xf32, #tpu.memory_space<vmem>>, vector<1x32xf32>
    %173 = vector.broadcast %172 : vector<1x32xf32> to vector<16x32xf32>
    %174 = arith.addf %171, %173 : vector<16x32xf32>
    %175 = arith.addf %174, %160 : vector<16x32xf32>
    %cst_90 = arith.constant dense<0.000000e+00> : vector<16xf32>
    %176 = vector.multi_reduction <add>, %175, %cst_90 [1] : vector<16x32xf32> to vector<16xf32>
    %177 = vector.shape_cast %176 : vector<16xf32> to vector<16x1xf32>
    %cst_91 = arith.constant 3.200000e+01 : f32
    %178 = vector.broadcast %cst_91 : f32 to vector<16x1xf32>
    %179 = arith.divf %177, %178 : vector<16x1xf32>
    %180 = vector.broadcast %179 : vector<16x1xf32> to vector<16x32xf32>
    %181 = arith.subf %175, %180 : vector<16x32xf32>
    %182 = arith.mulf %181, %181 : vector<16x32xf32>
    %cst_92 = arith.constant dense<0.000000e+00> : vector<16xf32>
    %183 = vector.multi_reduction <add>, %182, %cst_92 [1] : vector<16x32xf32> to vector<16xf32>
    %184 = vector.shape_cast %183 : vector<16xf32> to vector<16x1xf32>
    %cst_93 = arith.constant 3.200000e+01 : f32
    %185 = vector.broadcast %cst_93 : f32 to vector<16x1xf32>
    %186 = arith.divf %184, %185 : vector<16x1xf32>
    %187 = vector.broadcast %179 : vector<16x1xf32> to vector<16x32xf32>
    %188 = arith.subf %175, %187 : vector<16x32xf32>
    %cst_94 = arith.constant 9.99999997E-7 : f32
    %189 = vector.broadcast %cst_94 : f32 to vector<16x1xf32>
    %190 = arith.addf %186, %189 : vector<16x1xf32>
    %191 = math.rsqrt %190 : vector<16x1xf32>
    %192 = vector.broadcast %191 : vector<16x1xf32> to vector<16x32xf32>
    %193 = arith.mulf %188, %192 : vector<16x32xf32>
    %c0_95 = arith.constant 0 : index
    %c0_96 = arith.constant 0 : index
    %194 = vector.load %arg15[%c0_95, %c0_96] : memref<1x32xf32, #tpu.memory_space<vmem>>, vector<1x32xf32>
    %195 = vector.broadcast %194 : vector<1x32xf32> to vector<16x32xf32>
    %196 = arith.mulf %193, %195 : vector<16x32xf32>
    %c0_97 = arith.constant 0 : index
    %c0_98 = arith.constant 0 : index
    %197 = vector.load %arg16[%c0_97, %c0_98] : memref<1x32xf32, #tpu.memory_space<vmem>>, vector<1x32xf32>
    %198 = vector.broadcast %197 : vector<1x32xf32> to vector<16x32xf32>
    %199 = arith.addf %196, %198 : vector<16x32xf32>
    %200 = vector.broadcast %158 : vector<16x1xf32> to vector<16x32xf32>
    %201 = arith.mulf %199, %200 : vector<16x32xf32>
    %c0_99 = arith.constant 0 : index
    %c0_100 = arith.constant 0 : index
    %202 = vector.load %arg17[%c0_99, %c0_100] : memref<16x32xf32, #tpu.memory_space<vmem>>, vector<16x32xf32>
    tpu.vector_store %arg17[%c0_99, %c0_100], %201 {strides = array<i32>} : memref<16x32xf32, #tpu.memory_space<vmem>>, vector<16x32xf32>,
    return
  }
  func.func @transform_0(%arg0: i32) -> (i32, i32) {
    %c0_i32 = arith.constant 0 : i32
    %c0_i32_0 = arith.constant 0 : i32
    return %arg0, %c0_i32 : i32, i32
  }
  func.func @transform_1(%arg0: i32) -> (i32, i32, i32) {
    %c0_i32 = arith.constant 0 : i32
    %c0_i32_0 = arith.constant 0 : i32
    %c0_i32_1 = arith.constant 0 : i32
    return %arg0, %c0_i32, %c0_i32_0 : i32, i32, i32
  }
  func.func @transform_2(%arg0: i32) -> (i32, i32) {
    %c0_i32 = arith.constant 0 : i32
    %c0_i32_0 = arith.constant 0 : i32
    return %arg0, %c0_i32 : i32, i32
  }
  func.func @transform_3(%arg0: i32) -> (i32, i32) {
    %c0_i32 = arith.constant 0 : i32
    %c0_i32_0 = arith.constant 0 : i32
    %c0_i32_1 = arith.constant 0 : i32
    return %c0_i32, %c0_i32_0 : i32, i32
  }
  func.func @transform_4(%arg0: i32) -> (i32, i32) {
    %c0_i32 = arith.constant 0 : i32
    %c0_i32_0 = arith.constant 0 : i32
    %c0_i32_1 = arith.constant 0 : i32
    return %c0_i32, %c0_i32_0 : i32, i32
  }
  func.func @transform_5(%arg0: i32) -> (i32, i32) {
    %c0_i32 = arith.constant 0 : i32
    %c0_i32_0 = arith.constant 0 : i32
    %c0_i32_1 = arith.constant 0 : i32
    return %c0_i32, %c0_i32_0 : i32, i32
  }
  func.func @transform_6(%arg0: i32) -> (i32, i32) {
    %c0_i32 = arith.constant 0 : i32
    %c0_i32_0 = arith.constant 0 : i32
    %c0_i32_1 = arith.constant 0 : i32
    return %c0_i32, %c0_i32_0 : i32, i32
  }
  func.func @transform_7(%arg0: i32) -> (i32, i32, i32) {
    %c0_i32 = arith.constant 0 : i32
    %c0_i32_0 = arith.constant 0 : i32
    %c0_i32_1 = arith.constant 0 : i32
    %c0_i32_2 = arith.constant 0 : i32
    return %c0_i32, %c0_i32_0, %c0_i32_1 : i32, i32, i32
  }
  func.func @transform_8(%arg0: i32) -> (i32, i32) {
    %c0_i32 = arith.constant 0 : i32
    %c0_i32_0 = arith.constant 0 : i32
    %c0_i32_1 = arith.constant 0 : i32
    return %c0_i32, %c0_i32_0 : i32, i32
  }
  func.func @transform_9(%arg0: i32) -> (i32, i32) {
    %c0_i32 = arith.constant 0 : i32
    %c0_i32_0 = arith.constant 0 : i32
    %c0_i32_1 = arith.constant 0 : i32
    return %c0_i32, %c0_i32_0 : i32, i32
  }
  func.func @transform_10(%arg0: i32) -> (i32, i32) {
    %c0_i32 = arith.constant 0 : i32
    %c0_i32_0 = arith.constant 0 : i32
    %c0_i32_1 = arith.constant 0 : i32
    return %c0_i32, %c0_i32_0 : i32, i32
  }
  func.func @transform_11(%arg0: i32) -> (i32, i32) {
    %c0_i32 = arith.constant 0 : i32
    %c0_i32_0 = arith.constant 0 : i32
    %c0_i32_1 = arith.constant 0 : i32
    return %c0_i32, %c0_i32_0 : i32, i32
  }
  func.func @transform_12(%arg0: i32) -> (i32, i32) {
    %c0_i32 = arith.constant 0 : i32
    %c0_i32_0 = arith.constant 0 : i32
    %c0_i32_1 = arith.constant 0 : i32
    return %c0_i32, %c0_i32_0 : i32, i32
  }
  func.func @transform_13(%arg0: i32) -> (i32, i32) {
    %c0_i32 = arith.constant 0 : i32
    %c0_i32_0 = arith.constant 0 : i32
    %c0_i32_1 = arith.constant 0 : i32
    return %c0_i32, %c0_i32_0 : i32, i32
  }
  func.func @transform_14(%arg0: i32) -> (i32, i32) {
    %c0_i32 = arith.constant 0 : i32
    %c0_i32_0 = arith.constant 0 : i32
    %c0_i32_1 = arith.constant 0 : i32
    return %c0_i32, %c0_i32_0 : i32, i32
  }
  func.func @transform_15(%arg0: i32) -> (i32, i32) {
    %c0_i32 = arith.constant 0 : i32
    %c0_i32_0 = arith.constant 0 : i32
    %c0_i32_1 = arith.constant 0 : i32
    return %c0_i32, %c0_i32_0 : i32, i32
  }
  func.func @transform_16(%arg0: i32) -> (i32, i32) {
    %c0_i32 = arith.constant 0 : i32
    %c0_i32_0 = arith.constant 0 : i32
    return %arg0, %c0_i32 : i32, i32
  }
  func.func @transform_17(%arg0: i32) -> (i32, i32, i32, i32) {
    %c0_i32 = arith.constant 0 : i32
    %c0_i32_0 = arith.constant 0 : i32
    %c0_i32_1 = arith.constant 0 : i32
    %c0_i32_2 = arith.constant 0 : i32
    return %arg0, %c0_i32, %c0_i32_0, %c0_i32_1 : i32, i32, i32, i32
  }
}

</mosaic_0001>

<llo_original>
// kernel: tpu_custom_call.1
$region0: #{tpu_custom_call.1}
  #allocation0 [shape = 'u32[]', space=smem, size = 0x4, offset = 0x4, fixed_abs, tag = 'smem constant byte address 0x4 - core index']
  #allocation1 [shape = 'u32[144,128]{1,0:T(1,128)}', space=vmem, size = 0x12000, scoped, tag = 'internal scratch']
  #allocation2 [shape = 'f32[2,8,32]{2,1,0:T(8,128)}', space=vmem, size = 0x2000, scoped, tag = 'scratch operand']
  %s0 = inlined_call_operand.vmem [shape: f32[16,32], index: 0, kind: input, shape index: {}]
  %s1 = inlined_call_operand.vmem [shape: f32[2,8,8], index: 1, kind: input, shape index: {}]
  %s2 = inlined_call_operand.vmem [shape: f32[16,1], index: 2, kind: input, shape index: {}]
  %s3 = inlined_call_operand.hbm [shape: bf16[32,32], index: 3, kind: input, shape index: {}]
  %s4 = inlined_call_operand.hbm [shape: bf16[32,32], index: 4, kind: input, shape index: {}]
  %s5 = inlined_call_operand.hbm [shape: bf16[32,32], index: 5, kind: input, shape index: {}]
  %s6 = inlined_call_operand.hbm [shape: bf16[32,32], index: 6, kind: input, shape index: {}]
  %s7 = inlined_call_operand.vmem [shape: f32[4,8,8], index: 7, kind: input, shape index: {}]
  %s8 = inlined_call_operand.vmem [shape: f32[1,32], index: 8, kind: input, shape index: {}]
  %s9 = inlined_call_operand.hbm [shape: f32[1,32], index: 9, kind: input, shape index: {}]
  %s10 = inlined_call_operand.vmem [shape: bf16[32,64], index: 10, kind: input, shape index: {}]
  %s11 = inlined_call_operand.vmem [shape: f32[1,64], index: 11, kind: input, shape index: {}]
  %s12 = inlined_call_operand.vmem [shape: bf16[64,32], index: 12, kind: input, shape index: {}]
  %s13 = inlined_call_operand.vmem [shape: f32[1,32], index: 13, kind: input, shape index: {}]
  %s14 = inlined_call_operand.vmem [shape: f32[1,32], index: 14, kind: input, shape index: {}]
  %s15 = inlined_call_operand.vmem [shape: f32[1,32], index: 15, kind: input, shape index: {}]
  %s16 = inlined_call_operand.hbm [shape: f32[16,32], index: 16, kind: output, shape index: {0}]
  %s17 = inlined_call_operand.hbm [shape: f32[2,4,8,8], index: 17, kind: output, shape index: {1}]
  %18 = xla_tuple %s16, %s17
  %s19 = sld [smem:[#allocation0]]
  $region102: #{tpu_custom_call.1} parent=0
    _
  %s21 = ssub.s32 1, %s19
  %s22 = scalar_select 0, %s21, %s19
  $region1: #{tpu_custom_call.1} parent=0
    #allocation3 [shape = 'u8[8192]{0}', space=vmem, size = 0x2000, scoped, tag = 'input window, operand 3, single buffered']
    #allocation4 [shape = 's32[1]{0}', space=sflag, size = 0x4, scoped, tag = 'scoped memory for tpu_custom_call.1']
    #allocation5 [shape = 's32[1]{0}', space=sflag, size = 0x4, scoped, tag = 'scoped memory for tpu_custom_call.1']
    #allocation6 [shape = 'u8[8192]{0}', space=vmem, size = 0x2000, scoped, tag = 'input window, operand 4, single buffered']
    #allocation7 [shape = 's32[1]{0}', space=sflag, size = 0x4, scoped, tag = 'scoped memory for tpu_custom_call.1']
    #allocation8 [shape = 'u8[8192]{0}', space=vmem, size = 0x2000, scoped, tag = 'input window, operand 5, single buffered']
    #allocation9 [shape = 'u8[8192]{0}', space=vmem, size = 0x2000, scoped, tag = 'input window, operand 6, single buffered']
    #allocation10 [shape = 's32[1]{0}', space=sflag, size = 0x4, scoped, tag = 'scoped memory for tpu_custom_call.1']
    #allocation11 [shape = 'u8[512]{0}', space=vmem, size = 0x400, scoped, tag = 'input window, operand 9, single buffered']
    #allocation12 [shape = 'u8[8192]{0}', space=vmem, size = 0x2000, scoped, tag = 'output window, operand 0, single buffered']
    #allocation13 [shape = 'u8[32768]{0}', space=vmem, size = 0x8000, scoped, tag = 'output window, operand 1, single buffered']
    #allocation14 [shape = 's32[1]{0}', space=sflag, size = 0x4, scoped, tag = 'scoped memory for tpu_custom_call.1']
    %23 = vsyncpa [#allocation4], 0
    %24 = vsyncpa [#allocation7], 0
    %25 = vsyncpa [#allocation10], 0
    %26 = vsyncpa [#allocation5], 0
    %27 = vsyncpa [#allocation14], 0
    // Predicated region
    $region2: #{tpu_custom_call.1} parent=1 // pred_check
      _
    $region3: #{tpu_custom_call.1} parent=1 // pred_check_branch
      %29 = sbr.rel (0) target = $region5
    $region4: #{tpu_custom_call.1} parent=1 // pred_region
      _
    $region5: #{tpu_custom_call.1} parent=1 // pred_fallthru
      _
    // Predicated region
    $region6: #{tpu_custom_call.1} parent=1 // pred_check
      _
    $region7: #{tpu_custom_call.1} parent=1 // pred_check_branch
      %31 = sbr.rel (0) target = $region9
    $region8: #{tpu_custom_call.1} parent=1 // pred_region
      _
    $region9: #{tpu_custom_call.1} parent=1 // pred_fallthru
      _
    // Predicated region
    $region10: #{tpu_custom_call.1} parent=1 // pred_check
      _
    $region11: #{tpu_custom_call.1} parent=1 // pred_check_branch
      %33 = sbr.rel (0) target = $region13
    $region12: #{tpu_custom_call.1} parent=1 // pred_region
      _
    $region13: #{tpu_custom_call.1} parent=1 // pred_fallthru
      _
    // Predicated region
    $region14: #{tpu_custom_call.1} parent=1 // pred_check
      _
    $region15: #{tpu_custom_call.1} parent=1 // pred_check_branch
      %35 = sbr.rel (0) target = $region17
    $region16: #{tpu_custom_call.1} parent=1 // pred_region
      %s37 = ssub.s32 256, 256
      %38 = vsyncadd [#allocation4], %s37
      %s39 = sshll.u32 [#allocation3], 4
      %s40 = int_to_ptr.vmem [resolvable:$true] %s39
      %45 = dma.hbm_to_vmem [thread:$0]  %s3, 256, %s40, [#allocation4], 64, 64, 4
    $region17: #{tpu_custom_call.1} parent=1 // pred_fallthru
      _
    // Predicated region
    $region18: #{tpu_custom_call.1} parent=1 // pred_check
      _
    $region19: #{tpu_custom_call.1} parent=1 // pred_check_branch
      %47 = sbr.rel (0) target = $region21
    $region20: #{tpu_custom_call.1} parent=1 // pred_region
      %s49 = ssub.s32 256, 256
      %50 = vsyncadd [#allocation7], %s49
      %s51 = sshll.u32 [#allocation6], 4
      %s52 = int_to_ptr.vmem [resolvable:$true] %s51
      %57 = dma.hbm_to_vmem [thread:$0]  %s4, 256, %s52, [#allocation7], 64, 64, 4
    $region21: #{tpu_custom_call.1} parent=1 // pred_fallthru
      _
    // Predicated region
    $region22: #{tpu_custom_call.1} parent=1 // pred_check
      _
    $region23: #{tpu_custom_call.1} parent=1 // pred_check_branch
      %59 = sbr.rel (0) target = $region25
    $region24: #{tpu_custom_call.1} parent=1 // pred_region
      %s61 = ssub.s32 256, 256
      %62 = vsyncadd [#allocation7], %s61
      %s63 = sshll.u32 [#allocation8], 4
      %s64 = int_to_ptr.vmem [resolvable:$true] %s63
      %69 = dma.hbm_to_vmem [thread:$0]  %s5, 256, %s64, [#allocation7], 64, 64, 4
    $region25: #{tpu_custom_call.1} parent=1 // pred_fallthru
      _
    // Predicated region
    $region26: #{tpu_custom_call.1} parent=1 // pred_check
      _
    $region27: #{tpu_custom_call.1} parent=1 // pred_check_branch
      %71 = sbr.rel (0) target = $region29
    $region28: #{tpu_custom_call.1} parent=1 // pred_region
      %s73 = ssub.s32 256, 256
      %74 = vsyncadd [#allocation10], %s73
      %s75 = sshll.u32 [#allocation9], 4
      %s76 = int_to_ptr.vmem [resolvable:$true] %s75
      %81 = dma.hbm_to_vmem [thread:$0]  %s6, 256, %s76, [#allocation10], 64, 64, 4
    $region29: #{tpu_custom_call.1} parent=1 // pred_fallthru
      _
    // Predicated region
    $region30: #{tpu_custom_call.1} parent=1 // pred_check
      _
    $region31: #{tpu_custom_call.1} parent=1 // pred_check_branch
      %83 = sbr.rel (0) target = $region33
    $region32: #{tpu_custom_call.1} parent=1 // pred_region
      _
    $region33: #{tpu_custom_call.1} parent=1 // pred_fallthru
      _
    // Predicated region
    $region34: #{tpu_custom_call.1} parent=1 // pred_check
      _
    $region35: #{tpu_custom_call.1} parent=1 // pred_check_branch
      %85 = sbr.rel (0) target = $region37
    $region36: #{tpu_custom_call.1} parent=1 // pred_region
      _
    $region37: #{tpu_custom_call.1} parent=1 // pred_fallthru
      _
    // Predicated region
    $region38: #{tpu_custom_call.1} parent=1 // pred_check
      _
    $region39: #{tpu_custom_call.1} parent=1 // pred_check_branch
      %87 = sbr.rel (0) target = $region41
    $region40: #{tpu_custom_call.1} parent=1 // pred_region
      %s89 = ssub.s32 16, 16
      %90 = vsyncadd [#allocation10], %s89
      %s92 = sshll.u32 [#allocation11], 4
      %s93 = int_to_ptr.vmem [resolvable:$true] %s92
      %95 = dma.hbm_to_vmem [thread:$0]  %s9, 16, %s93, [#allocation10]
    $region41: #{tpu_custom_call.1} parent=1 // pred_fallthru
      _
    // Predicated region
    $region42: #{tpu_custom_call.1} parent=1 // pred_check
      _
    $region43: #{tpu_custom_call.1} parent=1 // pred_check_branch
      %97 = sbr.rel (0) target = $region45
    $region44: #{tpu_custom_call.1} parent=1 // pred_region
      _
    $region45: #{tpu_custom_call.1} parent=1 // pred_fallthru
      _
    // Predicated region
    $region46: #{tpu_custom_call.1} parent=1 // pred_check
      _
    $region47: #{tpu_custom_call.1} parent=1 // pred_check_branch
      %99 = sbr.rel (0) target = $region49
    $region48: #{tpu_custom_call.1} parent=1 // pred_region
      _
    $region49: #{tpu_custom_call.1} parent=1 // pred_fallthru
      _
    // Predicated region
    $region50: #{tpu_custom_call.1} parent=1 // pred_check
      _
    $region51: #{tpu_custom_call.1} parent=1 // pred_check_branch
      %101 = sbr.rel (0) target = $region53
    $region52: #{tpu_custom_call.1} parent=1 // pred_region
      _
    $region53: #{tpu_custom_call.1} parent=1 // pred_fallthru
      _
    // Predicated region
    $region54: #{tpu_custom_call.1} parent=1 // pred_check
      _
    $region55: #{tpu_custom_call.1} parent=1 // pred_check_branch
      %103 = sbr.rel (0) target = $region57
    $region56: #{tpu_custom_call.1} parent=1 // pred_region
      _
    $region57: #{tpu_custom_call.1} parent=1 // pred_fallthru
      _
    // Predicated region
    $region58: #{tpu_custom_call.1} parent=1 // pred_check
      _
    $region59: #{tpu_custom_call.1} parent=1 // pred_check_branch
      %105 = sbr.rel (0) target = $region61
    $region60: #{tpu_custom_call.1} parent=1 // pred_region
      _
    $region61: #{tpu_custom_call.1} parent=1 // pred_fallthru
      _
    // Predicated region
    $region62: #{tpu_custom_call.1} parent=1 // pred_check
      _
    $region63: #{tpu_custom_call.1} parent=1 // pred_check_branch
      %107 = sbr.rel (0) target = $region65
    $region64: #{tpu_custom_call.1} parent=1 // pred_region
      _
    $region65: #{tpu_custom_call.1} parent=1 // pred_fallthru
      _
    // Predicated region
    $region66: #{tpu_custom_call.1} parent=1 // pred_check
      _
    $region67: #{tpu_custom_call.1} parent=1 // pred_check_branch
      %109 = sbr.rel (0) target = $region69
    $region68: #{tpu_custom_call.1} parent=1 // pred_region
      %110 = dma.done [#allocation4], 256
    $region69: #{tpu_custom_call.1} parent=1 // pred_fallthru
      _
    // Predicated region
    $region70: #{tpu_custom_call.1} parent=1 // pred_check
      _
    $region71: #{tpu_custom_call.1} parent=1 // pred_check_branch
      %112 = sbr.rel (0) target = $region73
    $region72: #{tpu_custom_call.1} parent=1 // pred_region
      %113 = dma.done [#allocation7], 256
    $region73: #{tpu_custom_call.1} parent=1 // pred_fallthru
      _
    // Predicated region
    $region74: #{tpu_custom_call.1} parent=1 // pred_check
      _
    $region75: #{tpu_custom_call.1} parent=1 // pred_check_branch
      %115 = sbr.rel (0) target = $region77
    $region76: #{tpu_custom_call.1} parent=1 // pred_region
      %116 = dma.done [#allocation7], 256
    $region77: #{tpu_custom_call.1} parent=1 // pred_fallthru
      _
    // Predicated region
    $region78: #{tpu_custom_call.1} parent=1 // pred_check
      _
    $region79: #{tpu_custom_call.1} parent=1 // pred_check_branch
      %118 = sbr.rel (0) target = $region81
    $region80: #{tpu_custom_call.1} parent=1 // pred_region
      %119 = dma.done [#allocation10], 256
    $region81: #{tpu_custom_call.1} parent=1 // pred_fallthru
      _
    // Predicated region
    $region82: #{tpu_custom_call.1} parent=1 // pred_check
      _
    $region83: #{tpu_custom_call.1} parent=1 // pred_check_branch
      %121 = sbr.rel (0) target = $region85
    $region84: #{tpu_custom_call.1} parent=1 // pred_region
      %122 = dma.done [#allocation10], 16
    $region85: #{tpu_custom_call.1} parent=1 // pred_fallthru
      _
    %v124 = vld [vmem:[%s0] sm:$0xff]
    %v125 = vld [vmem:[%s0 + $0x8] sm:$0xff]
    %v126 = vpack.c.bf16 %v125, %v124
    %v127 = vld [vmem:[#allocation3] sm:$0xf]
    %v128 = vld [vmem:[#allocation3 + $0x4] sm:$0xf]
    %v129 = vld [vmem:[#allocation3 + $0x8] sm:$0xf]
    %v130 = vld [vmem:[#allocation3 + $0xc] sm:$0xf]
    %v135 = vunpack.c.l.b16 %v127
    %v136 = vunpack.c.l.b16 %v128
    %v137 = vunpack.c.l.b16 %v129
    %v138 = vunpack.c.l.b16 %v130
    %v139 = vpack.c.b16 %v136, %v135
    %v140 = vpack.c.b16 %v138, %v137
    %vm143 = vcmask 261120
    %v145 = vsel %vm143, %v126, 0
    %147 = vmatprep.subr.bf16.mxu0 0
    %148 = vmatpush1.bf16.msra.mxu0 0
    %149 = vmatprep.subr.bf16.mxu0 0
    %150 = vmatpush1.bf16.msra.mxu0 0
    %151 = vmatprep.subr.bf16.mxu0 0
    %152 = vmatpush1.bf16.msra.mxu0 0
    %153 = vmatprep.subr.bf16.mxu0 0
    %154 = vmatpush1.bf16.msra.mxu0 0
    %155 = vmatprep.subr.bf16.mxu0 0
    %156 = vmatpush1.bf16.msra.mxu0 0
    %157 = vmatprep.subr.bf16.mxu0 0
    %158 = vmatpush1.bf16.msra.mxu0 0
    %159 = vmatprep.subr.bf16.mxu0 0
    %160 = vmatpush1.bf16.msra.mxu0 %v140
    %161 = vmatprep.subr.bf16.mxu0 0
    %162 = vmatpush1.bf16.msra.mxu0 %v139
    %163 = vmatprep.subr.bf16.mxu0 0
    %164 = vmatpush2.bf16.msra.mxu0 0
    %165 = vmatprep.subr.bf16.mxu0 0
    %166 = vmatpush2.bf16.msra.mxu0 0
    %167 = vmatprep.subr.bf16.mxu0 0
    %168 = vmatpush2.bf16.msra.mxu0 0
    %169 = vmatprep.subr.bf16.mxu0 0
    %170 = vmatpush2.bf16.msra.mxu0 0
    %171 = vmatprep.subr.bf16.mxu0 0
    %172 = vmatpush2.bf16.msra.mxu0 0
    %173 = vmatprep.subr.bf16.mxu0 0
    %174 = vmatpush2.bf16.msra.mxu0 0
    %175 = vmatprep.subr.bf16.mxu0 0
    %176 = vmatpush2.bf16.msra.mxu0 0
    %177 = vmatprep.subr.bf16.mxu0 0
    %178 = vmatpush2.bf16.msra.mxu0 0
    %179 = vmatprep.mubr.bf16.mxu0 0
    %180 = vmatmul.mubr.bf16.gmra.mxu0 %v145
    %v181 = vpop.f32.mrf.mxu0
    %v182 = vadd.f32 0.0, %v181
    %v183 = vpop.f32.mrf.mxu0
    %v184 = vpop.f32.mrf.mxu0
    %v185 = vadd.f32 0.0, %v184
    %v186 = vpop.f32.mrf.mxu0
    %187 = vdwg.mxu0
    %v188 = vld [vmem:[#allocation6] sm:$0xf]
    %v189 = vld [vmem:[#allocation6 + $0x4] sm:$0xf]
    %v190 = vld [vmem:[#allocation6 + $0x8] sm:$0xf]
    %v191 = vld [vmem:[#allocation6 + $0xc] sm:$0xf]
    %v196 = vunpack.c.l.b16 %v188
    %v197 = vunpack.c.l.b16 %v189
    %v198 = vunpack.c.l.b16 %v190
    %v199 = vunpack.c.l.b16 %v191
    %v200 = vpack.c.b16 %v197, %v196
    %v201 = vpack.c.b16 %v199, %v198
    %204 = vmatprep.subr.bf16.mxu0 0
    %205 = vmatpush1.bf16.msra.mxu0 0
    %206 = vmatprep.subr.bf16.mxu0 0
    %207 = vmatpush1.bf16.msra.mxu0 0
    %208 = vmatprep.subr.bf16.mxu0 0
    %209 = vmatpush1.bf16.msra.mxu0 0
    %210 = vmatprep.subr.bf16.mxu0 0
    %211 = vmatpush1.bf16.msra.mxu0 0
    %212 = vmatprep.subr.bf16.mxu0 0
    %213 = vmatpush1.bf16.msra.mxu0 0
    %214 = vmatprep.subr.bf16.mxu0 0
    %215 = vmatpush1.bf16.msra.mxu0 0
    %216 = vmatprep.subr.bf16.mxu0 0
    %217 = vmatpush1.bf16.msra.mxu0 %v201
    %218 = vmatprep.subr.bf16.mxu0 0
    %219 = vmatpush1.bf16.msra.mxu0 %v200
    %220 = vmatprep.subr.bf16.mxu0 0
    %221 = vmatpush2.bf16.msra.mxu0 0
    %222 = vmatprep.subr.bf16.mxu0 0
    %223 = vmatpush2.bf16.msra.mxu0 0
    %224 = vmatprep.subr.bf16.mxu0 0
    %225 = vmatpush2.bf16.msra.mxu0 0
    %226 = vmatprep.subr.bf16.mxu0 0
    %227 = vmatpush2.bf16.msra.mxu0 0
    %228 = vmatprep.subr.bf16.mxu0 0
    %229 = vmatpush2.bf16.msra.mxu0 0
    %230 = vmatprep.subr.bf16.mxu0 0
    %231 = vmatpush2.bf16.msra.mxu0 0
    %232 = vmatprep.subr.bf16.mxu0 0
    %233 = vmatpush2.bf16.msra.mxu0 0
    %234 = vmatprep.subr.bf16.mxu0 0
    %235 = vmatpush2.bf16.msra.mxu0 0
    %236 = vmatprep.mubr.bf16.mxu0 0
    %237 = vmatmul.mubr.bf16.gmra.mxu0 %v145
    %v238 = vpop.f32.mrf.mxu0
    %v239 = vadd.f32 0.0, %v238
    %v240 = vpop.f32.mrf.mxu0
    %v241 = vpop.f32.mrf.mxu0
    %v242 = vadd.f32 0.0, %v241
    %v243 = vpop.f32.mrf.mxu0
    %244 = vdwg.mxu0
    %v245 = vld [vmem:[#allocation8] sm:$0xf]
    %v246 = vld [vmem:[#allocation8 + $0x4] sm:$0xf]
    %v247 = vld [vmem:[#allocation8 + $0x8] sm:$0xf]
    %v248 = vld [vmem:[#allocation8 + $0xc] sm:$0xf]
    %v253 = vunpack.c.l.b16 %v245
    %v254 = vunpack.c.l.b16 %v246
    %v255 = vunpack.c.l.b16 %v247
    %v256 = vunpack.c.l.b16 %v248
    %v257 = vpack.c.b16 %v254, %v253
    %v258 = vpack.c.b16 %v256, %v255
    %261 = vmatprep.subr.bf16.mxu0 0
    %262 = vmatpush1.bf16.msra.mxu0 0
    %263 = vmatprep.subr.bf16.mxu0 0
    %264 = vmatpush1.bf16.msra.mxu0 0
    %265 = vmatprep.subr.bf16.mxu0 0
    %266 = vmatpush1.bf16.msra.mxu0 0
    %267 = vmatprep.subr.bf16.mxu0 0
    %268 = vmatpush1.bf16.msra.mxu0 0
    %269 = vmatprep.subr.bf16.mxu0 0
    %270 = vmatpush1.bf16.msra.mxu0 0
    %271 = vmatprep.subr.bf16.mxu0 0
    %272 = vmatpush1.bf16.msra.mxu0 0
    %273 = vmatprep.subr.bf16.mxu0 0
    %274 = vmatpush1.bf16.msra.mxu0 %v258
    %275 = vmatprep.subr.bf16.mxu0 0
    %276 = vmatpush1.bf16.msra.mxu0 %v257
    %277 = vmatprep.subr.bf16.mxu0 0
    %278 = vmatpush2.bf16.msra.mxu0 0
    %279 = vmatprep.subr.bf16.mxu0 0
    %280 = vmatpush2.bf16.msra.mxu0 0
    %281 = vmatprep.subr.bf16.mxu0 0
    %282 = vmatpush2.bf16.msra.mxu0 0
    %283 = vmatprep.subr.bf16.mxu0 0
    %284 = vmatpush2.bf16.msra.mxu0 0
    %285 = vmatprep.subr.bf16.mxu0 0
    %286 = vmatpush2.bf16.msra.mxu0 0
    %287 = vmatprep.subr.bf16.mxu0 0
    %288 = vmatpush2.bf16.msra.mxu0 0
    %289 = vmatprep.subr.bf16.mxu0 0
    %290 = vmatpush2.bf16.msra.mxu0 0
    %291 = vmatprep.subr.bf16.mxu0 0
    %292 = vmatpush2.bf16.msra.mxu0 0
    %293 = vmatprep.mubr.bf16.mxu0 0
    %294 = vmatmul.mubr.bf16.gmra.mxu0 %v145
    %v295 = vpop.f32.mrf.mxu0
    %v296 = vadd.f32 0.0, %v295
    %v297 = vpop.f32.mrf.mxu0
    %v298 = vpop.f32.mrf.mxu0
    %v299 = vadd.f32 0.0, %v298
    %v300 = vpop.f32.mrf.mxu0
    %301 = vdwg.mxu0
    %v302 = vld [vmem:[%s1] sm:$0xff]
    %v303 = vld [vmem:[%s1 + $0x8] sm:$0xff]
    %v304 = vpack.c.bf16 %v182, %v182
    %v305 = vpack.c.bf16 %v185, %v185
    %v306 = vpack.c.bf16 %v239, %v239
    %v307 = vpack.c.bf16 %v242, %v242
    %v308 = vpack.c.bf16 %v296, %v296
    %v309 = vpack.c.bf16 %v299, %v299
    %v310 = vld [vmem:[%s7] sm:$0xff]
    %vm311 = vcmask 64512
    %v313 = vsel %vm311, %v304, 0
    %v316 = vsel %vm311, %v306, 0
    %318 = vmatprep.subr.bf16.mxu0 0
    %319 = vmatpush1.bf16.xpose.msra.mxu0 0
    %320 = vmatprep.subr.bf16.mxu0 0
    %321 = vmatpush1.bf16.xpose.msra.mxu0 0
    %322 = vmatprep.subr.bf16.mxu0 0
    %323 = vmatpush1.bf16.xpose.msra.mxu0 0
    %324 = vmatprep.subr.bf16.mxu0 0
    %325 = vmatpush1.bf16.xpose.msra.mxu0 0
    %326 = vmatprep.subr.bf16.mxu0 0
    %327 = vmatpush1.bf16.xpose.msra.mxu0 0
    %328 = vmatprep.subr.bf16.mxu0 0
    %329 = vmatpush1.bf16.xpose.msra.mxu0 0
    %330 = vmatprep.subr.bf16.mxu0 0
    %331 = vmatpush1.bf16.xpose.msra.mxu0 0
    %332 = vmatprep.subr.bf16.mxu0 0
    %333 = vmatpush1.bf16.xpose.msra.mxu0 %v316
    %334 = vmatprep.subr.bf16.mxu0 0
    %335 = vmatpush2.bf16.xpose.msra.mxu0 0
    %336 = vmatprep.subr.bf16.mxu0 0
    %337 = vmatpush2.bf16.xpose.msra.mxu0 0
    %338 = vmatprep.subr.bf16.mxu0 0
    %339 = vmatpush2.bf16.xpose.msra.mxu0 0
    %340 = vmatprep.subr.bf16.mxu0 0
    %341 = vmatpush2.bf16.xpose.msra.mxu0 0
    %342 = vmatprep.subr.bf16.mxu0 0
    %343 = vmatpush2.bf16.xpose.msra.mxu0 0
    %344 = vmatprep.subr.bf16.mxu0 0
    %345 = vmatpush2.bf16.xpose.msra.mxu0 0
    %346 = vmatprep.subr.bf16.mxu0 0
    %347 = vmatpush2.bf16.xpose.msra.mxu0 0
    %348 = vmatprep.subr.bf16.mxu0 0
    %349 = vmatpush2.bf16.xpose.msra.mxu0 0
    %350 = vmatprep.mubr.bf16.mxu0 0
    %351 = vmatmul.mubr.bf16.gmra.mxu0 %v313
    %v352 = vpop.f32.mrf.mxu0
    %v353 = vadd.f32 %v310, %v352
    %v354 = vpop.f32.mrf.mxu0
    %v355 = vpop.f32.mrf.mxu0
    %v356 = vpop.f32.mrf.mxu0
    %357 = vdwg.mxu0
    %v359 = vsel %vm311, %v305, 0
    %v362 = vsel %vm311, %v307, 0
    %364 = vmatprep.subr.bf16.mxu0 0
    %365 = vmatpush1.bf16.xpose.msra.mxu0 0
    %366 = vmatprep.subr.bf16.mxu0 0
    %367 = vmatpush1.bf16.xpose.msra.mxu0 0
    %368 = vmatprep.subr.bf16.mxu0 0
    %369 = vmatpush1.bf16.xpose.msra.mxu0 0
    %370 = vmatprep.subr.bf16.mxu0 0
    %371 = vmatpush1.bf16.xpose.msra.mxu0 0
    %372 = vmatprep.subr.bf16.mxu0 0
    %373 = vmatpush1.bf16.xpose.msra.mxu0 0
    %374 = vmatprep.subr.bf16.mxu0 0
    %375 = vmatpush1.bf16.xpose.msra.mxu0 0
    %376 = vmatprep.subr.bf16.mxu0 0
    %377 = vmatpush1.bf16.xpose.msra.mxu0 0
    %378 = vmatprep.subr.bf16.mxu0 0
    %379 = vmatpush1.bf16.xpose.msra.mxu0 %v362
    %380 = vmatprep.subr.bf16.mxu0 0
    %381 = vmatpush2.bf16.xpose.msra.mxu0 0
    %382 = vmatprep.subr.bf16.mxu0 0
    %383 = vmatpush2.bf16.xpose.msra.mxu0 0
    %384 = vmatprep.subr.bf16.mxu0 0
    %385 = vmatpush2.bf16.xpose.msra.mxu0 0
    %386 = vmatprep.subr.bf16.mxu0 0
    %387 = vmatpush2.bf16.xpose.msra.mxu0 0
    %388 = vmatprep.subr.bf16.mxu0 0
    %389 = vmatpush2.bf16.xpose.msra.mxu0 0
    %390 = vmatprep.subr.bf16.mxu0 0
    %391 = vmatpush2.bf16.xpose.msra.mxu0 0
    %392 = vmatprep.subr.bf16.mxu0 0
    %393 = vmatpush2.bf16.xpose.msra.mxu0 0
    %394 = vmatprep.subr.bf16.mxu0 0
    %395 = vmatpush2.bf16.xpose.msra.mxu0 0
    %396 = vmatprep.mubr.bf16.mxu0 0
    %397 = vmatmul.mubr.bf16.gmra.mxu0 %v359
    %v398 = vpop.f32.mrf.mxu0
    %v399 = vadd.f32 %v310, %v398
    %v400 = vpop.f32.mrf.mxu0
    %v401 = vpop.f32.mrf.mxu0
    %v402 = vpop.f32.mrf.mxu0
    %403 = vdwg.mxu0
    %v404 = vadd.f32 %v353, %v302
    %v405 = vadd.f32 %v399, %v303
    %v406 = vsel %vm311, %v404, -inf
    %407 = vmax.xlane.f32.xlu0 %v406
    %v408 = vpop.xlane.xlu0 %407
    %v409 = vsel %vm311, %v405, -inf
    %410 = vmax.xlane.f32.xlu0 %v409
    %v411 = vpop.xlane.xlu0 %410
    %v412 = vsub.f32 %v404, %v408
    %v413 = vsub.f32 %v405, %v411
    %v414 = vmul.f32 %v412, 1.442695
    %v415 = vpow.pop %v414
    %v416 = vmul.f32 %v413, 1.442695
    %v417 = vpow.pop %v416
    %v418 = vsel %vm311, %v415, 0.0
    %419 = vadd.xlane.f32.xlu0 %v418
    %v420 = vpop.xlane.xlu0 %419
    %v421 = vsel %vm311, %v417, 0.0
    %422 = vadd.xlane.f32.xlu0 %v421
    %v423 = vpop.xlane.xlu0 %422
    %v424 = vrcp.pop %v420
    %v425 = vrcp.pop %v423
    %v426 = vmul.f32 %v415, %v424
    %v427 = vmul.f32 %v417, %v425
    %428 = vst.msk [vmem:[#allocation13] sm:$0xff] %vm311, %v426
    %429 = vst.msk [vmem:[#allocation13 + $0x20] sm:$0xff] %vm311, %v427
    %v430 = vpack.c.bf16 %v426, %v426
    %v431 = vpack.c.bf16 %v427, %v427
    %v433 = vsel %vm311, %v430, 0
    %vm435 = vcmask 1043456
    %v437 = vsel %vm435, %v308, 0
    %439 = vmatprep.subr.bf16.mxu0 0
    %440 = vmatpush1.bf16.msra.mxu0 0
    %441 = vmatprep.subr.bf16.mxu0 0
    %442 = vmatpush1.bf16.msra.mxu0 0
    %443 = vmatprep.subr.bf16.mxu0 0
    %444 = vmatpush1.bf16.msra.mxu0 0
    %445 = vmatprep.subr.bf16.mxu0 0
    %446 = vmatpush1.bf16.msra.mxu0 0
    %447 = vmatprep.subr.bf16.mxu0 0
    %448 = vmatpush1.bf16.msra.mxu0 0
    %449 = vmatprep.subr.bf16.mxu0 0
    %450 = vmatpush1.bf16.msra.mxu0 0
    %451 = vmatprep.subr.bf16.mxu0 0
    %452 = vmatpush1.bf16.msra.mxu0 0
    %453 = vmatprep.subr.bf16.mxu0 0
    %454 = vmatpush1.bf16.msra.mxu0 %v437
    %455 = vmatprep.subr.bf16.mxu0 0
    %456 = vmatpush2.bf16.msra.mxu0 0
    %457 = vmatprep.subr.bf16.mxu0 0
    %458 = vmatpush2.bf16.msra.mxu0 0
    %459 = vmatprep.subr.bf16.mxu0 0
    %460 = vmatpush2.bf16.msra.mxu0 0
    %461 = vmatprep.subr.bf16.mxu0 0
    %462 = vmatpush2.bf16.msra.mxu0 0
    %463 = vmatprep.subr.bf16.mxu0 0
    %464 = vmatpush2.bf16.msra.mxu0 0
    %465 = vmatprep.subr.bf16.mxu0 0
    %466 = vmatpush2.bf16.msra.mxu0 0
    %467 = vmatprep.subr.bf16.mxu0 0
    %468 = vmatpush2.bf16.msra.mxu0 0
    %469 = vmatprep.subr.bf16.mxu0 0
    %470 = vmatpush2.bf16.msra.mxu0 0
    %471 = vmatprep.mubr.bf16.mxu0 0
    %472 = vmatmul.mubr.bf16.gmra.mxu0 %v433
    %v473 = vpop.f32.mrf.mxu0
    %v474 = vadd.f32 0.0, %v473
    %v475 = vpop.f32.mrf.mxu0
    %v476 = vpop.f32.mrf.mxu0
    %v477 = vpop.f32.mrf.mxu0
    %478 = vdwg.mxu0
    %v480 = vsel %vm311, %v431, 0
    %v483 = vsel %vm435, %v309, 0
    %485 = vmatprep.subr.bf16.mxu0 0
    %486 = vmatpush1.bf16.msra.mxu0 0
    %487 = vmatprep.subr.bf16.mxu0 0
    %488 = vmatpush1.bf16.msra.mxu0 0
    %489 = vmatprep.subr.bf16.mxu0 0
    %490 = vmatpush1.bf16.msra.mxu0 0
    %491 = vmatprep.subr.bf16.mxu0 0
    %492 = vmatpush1.bf16.msra.mxu0 0
    %493 = vmatprep.subr.bf16.mxu0 0
    %494 = vmatpush1.bf16.msra.mxu0 0
    %495 = vmatprep.subr.bf16.mxu0 0
    %496 = vmatpush1.bf16.msra.mxu0 0
    %497 = vmatprep.subr.bf16.mxu0 0
    %498 = vmatpush1.bf16.msra.mxu0 0
    %499 = vmatprep.subr.bf16.mxu0 0
    %500 = vmatpush1.bf16.msra.mxu0 %v483
    %501 = vmatprep.subr.bf16.mxu0 0
    %502 = vmatpush2.bf16.msra.mxu0 0
    %503 = vmatprep.subr.bf16.mxu0 0
    %504 = vmatpush2.bf16.msra.mxu0 0
    %505 = vmatprep.subr.bf16.mxu0 0
    %506 = vmatpush2.bf16.msra.mxu0 0
    %507 = vmatprep.subr.bf16.mxu0 0
    %508 = vmatpush2.bf16.msra.mxu0 0
    %509 = vmatprep.subr.bf16.mxu0 0
    %510 = vmatpush2.bf16.msra.mxu0 0
    %511 = vmatprep.subr.bf16.mxu0 0
    %512 = vmatpush2.bf16.msra.mxu0 0
    %513 = vmatprep.subr.bf16.mxu0 0
    %514 = vmatpush2.bf16.msra.mxu0 0
    %515 = vmatprep.subr.bf16.mxu0 0
    %516 = vmatpush2.bf16.msra.mxu0 0
    %517 = vmatprep.mubr.bf16.mxu0 0
    %518 = vmatmul.mubr.bf16.gmra.mxu0 %v480
    %v519 = vpop.f32.mrf.mxu0
    %v520 = vadd.f32 0.0, %v519
    %v521 = vpop.f32.mrf.mxu0
    %v522 = vpop.f32.mrf.mxu0
    %v523 = vpop.f32.mrf.mxu0
    %524 = vdwg.mxu0
    %525 = vst.msk [vmem:[#allocation2] sm:$0xff] %vm311, %v474
    %526 = vst.msk [vmem:[#allocation2 + $0x8] sm:$0xff] %vm311, %v520
    %s527 = scalar_lea.vmem %s7, 8
    %v528 = vld [vmem:[%s527] sm:$0xff]
    %530 = vrot.lane.b32.xlu0 %v304, 120
    %v531 = vpop.permute.xlu0 %530
    %533 = vrot.lane.b32.xlu0 %v306, 120
    %v534 = vpop.permute.xlu0 %533
    %v536 = vsel %vm311, %v531, 0
    %v539 = vsel %vm311, %v534, 0
    %541 = vmatprep.subr.bf16.mxu0 0
    %542 = vmatpush1.bf16.xpose.msra.mxu0 0
    %543 = vmatprep.subr.bf16.mxu0 0
    %544 = vmatpush1.bf16.xpose.msra.mxu0 0
    %545 = vmatprep.subr.bf16.mxu0 0
    %546 = vmatpush1.bf16.xpose.msra.mxu0 0
    %547 = vmatprep.subr.bf16.mxu0 0
    %548 = vmatpush1.bf16.xpose.msra.mxu0 0
    %549 = vmatprep.subr.bf16.mxu0 0
    %550 = vmatpush1.bf16.xpose.msra.mxu0 0
    %551 = vmatprep.subr.bf16.mxu0 0
    %552 = vmatpush1.bf16.xpose.msra.mxu0 0
    %553 = vmatprep.subr.bf16.mxu0 0
    %554 = vmatpush1.bf16.xpose.msra.mxu0 0
    %555 = vmatprep.subr.bf16.mxu0 0
    %556 = vmatpush1.bf16.xpose.msra.mxu0 %v539
    %557 = vmatprep.subr.bf16.mxu0 0
    %558 = vmatpush2.bf16.xpose.msra.mxu0 0
    %559 = vmatprep.subr.bf16.mxu0 0
    %560 = vmatpush2.bf16.xpose.msra.mxu0 0
    %561 = vmatprep.subr.bf16.mxu0 0
    %562 = vmatpush2.bf16.xpose.msra.mxu0 0
    %563 = vmatprep.subr.bf16.mxu0 0
    %564 = vmatpush2.bf16.xpose.msra.mxu0 0
    %565 = vmatprep.subr.bf16.mxu0 0
    %566 = vmatpush2.bf16.xpose.msra.mxu0 0
    %567 = vmatprep.subr.bf16.mxu0 0
    %568 = vmatpush2.bf16.xpose.msra.mxu0 0
    %569 = vmatprep.subr.bf16.mxu0 0
    %570 = vmatpush2.bf16.xpose.msra.mxu0 0
    %571 = vmatprep.subr.bf16.mxu0 0
    %572 = vmatpush2.bf16.xpose.msra.mxu0 0
    %573 = vmatprep.mubr.bf16.mxu0 0
    %574 = vmatmul.mubr.bf16.gmra.mxu0 %v536
    %v575 = vpop.f32.mrf.mxu0
    %v576 = vadd.f32 %v528, %v575
    %v577 = vpop.f32.mrf.mxu0
    %v578 = vpop.f32.mrf.mxu0
    %v579 = vpop.f32.mrf.mxu0
    %580 = vdwg.mxu0
    %582 = vrot.lane.b32.xlu0 %v305, 120
    %v583 = vpop.permute.xlu0 %582
    %585 = vrot.lane.b32.xlu0 %v307, 120
    %v586 = vpop.permute.xlu0 %585
    %v588 = vsel %vm311, %v583, 0
    %v591 = vsel %vm311, %v586, 0
    %593 = vmatprep.subr.bf16.mxu0 0
    %594 = vmatpush1.bf16.xpose.msra.mxu0 0
    %595 = vmatprep.subr.bf16.mxu0 0
    %596 = vmatpush1.bf16.xpose.msra.mxu0 0
    %597 = vmatprep.subr.bf16.mxu0 0
    %598 = vmatpush1.bf16.xpose.msra.mxu0 0
    %599 = vmatprep.subr.bf16.mxu0 0
    %600 = vmatpush1.bf16.xpose.msra.mxu0 0
    %601 = vmatprep.subr.bf16.mxu0 0
    %602 = vmatpush1.bf16.xpose.msra.mxu0 0
    %603 = vmatprep.subr.bf16.mxu0 0
    %604 = vmatpush1.bf16.xpose.msra.mxu0 0
    %605 = vmatprep.subr.bf16.mxu0 0
    %606 = vmatpush1.bf16.xpose.msra.mxu0 0
    %607 = vmatprep.subr.bf16.mxu0 0
    %608 = vmatpush1.bf16.xpose.msra.mxu0 %v591
    %609 = vmatprep.subr.bf16.mxu0 0
    %610 = vmatpush2.bf16.xpose.msra.mxu0 0
    %611 = vmatprep.subr.bf16.mxu0 0
    %612 = vmatpush2.bf16.xpose.msra.mxu0 0
    %613 = vmatprep.subr.bf16.mxu0 0
    %614 = vmatpush2.bf16.xpose.msra.mxu0 0
    %615 = vmatprep.subr.bf16.mxu0 0
    %616 = vmatpush2.bf16.xpose.msra.mxu0 0
    %617 = vmatprep.subr.bf16.mxu0 0
    %618 = vmatpush2.bf16.xpose.msra.mxu0 0
    %619 = vmatprep.subr.bf16.mxu0 0
    %620 = vmatpush2.bf16.xpose.msra.mxu0 0
    %621 = vmatprep.subr.bf16.mxu0 0
    %622 = vmatpush2.bf16.xpose.msra.mxu0 0
    %623 = vmatprep.subr.bf16.mxu0 0
    %624 = vmatpush2.bf16.xpose.msra.mxu0 0
    %625 = vmatprep.mubr.bf16.mxu0 0
    %626 = vmatmul.mubr.bf16.gmra.mxu0 %v588
    %v627 = vpop.f32.mrf.mxu0
    %v628 = vadd.f32 %v528, %v627
    %v629 = vpop.f32.mrf.mxu0
    %v630 = vpop.f32.mrf.mxu0
    %v631 = vpop.f32.mrf.mxu0
    %632 = vdwg.mxu0
    %v633 = vadd.f32 %v576, %v302
    %v634 = vadd.f32 %v628, %v303
    %v635 = vsel %vm311, %v633, -inf
    %636 = vmax.xlane.f32.xlu0 %v635
    %v637 = vpop.xlane.xlu0 %636
    %v638 = vsel %vm311, %v634, -inf
    %639 = vmax.xlane.f32.xlu0 %v638
    %v640 = vpop.xlane.xlu0 %639
    %v641 = vsub.f32 %v633, %v637
    %v642 = vsub.f32 %v634, %v640
    %v643 = vmul.f32 %v641, 1.442695
    %v644 = vpow.pop %v643
    %v645 = vmul.f32 %v642, 1.442695
    %v646 = vpow.pop %v645
    %v647 = vsel %vm311, %v644, 0.0
    %648 = vadd.xlane.f32.xlu0 %v647
    %v649 = vpop.xlane.xlu0 %648
    %v650 = vsel %vm311, %v646, 0.0
    %651 = vadd.xlane.f32.xlu0 %v650
    %v652 = vpop.xlane.xlu0 %651
    %v653 = vrcp.pop %v649
    %v654 = vrcp.pop %v652
    %v655 = vmul.f32 %v644, %v653
    %v656 = vmul.f32 %v646, %v654
    %s657 = scalar_lea.vmem [#allocation13], 8
    %658 = vst.msk [vmem:[%s657] sm:$0xff] %vm311, %v655
    %659 = vst.msk [vmem:[%s657 + $0x20] sm:$0xff] %vm311, %v656
    %v660 = vpack.c.bf16 %v655, %v655
    %v661 = vpack.c.bf16 %v656, %v656
    %663 = vrot.lane.b32.xlu0 %v308, 120
    %v664 = vpop.permute.xlu0 %663
    %v666 = vsel %vm311, %v660, 0
    %v669 = vsel %vm435, %v664, 0
    %671 = vmatprep.subr.bf16.mxu0 0
    %672 = vmatpush1.bf16.msra.mxu0 0
    %673 = vmatprep.subr.bf16.mxu0 0
    %674 = vmatpush1.bf16.msra.mxu0 0
    %675 = vmatprep.subr.bf16.mxu0 0
    %676 = vmatpush1.bf16.msra.mxu0 0
    %677 = vmatprep.subr.bf16.mxu0 0
    %678 = vmatpush1.bf16.msra.mxu0 0
    %679 = vmatprep.subr.bf16.mxu0 0
    %680 = vmatpush1.bf16.msra.mxu0 0
    %681 = vmatprep.subr.bf16.mxu0 0
    %682 = vmatpush1.bf16.msra.mxu0 0
    %683 = vmatprep.subr.bf16.mxu0 0
    %684 = vmatpush1.bf16.msra.mxu0 0
    %685 = vmatprep.subr.bf16.mxu0 0
    %686 = vmatpush1.bf16.msra.mxu0 %v669
    %687 = vmatprep.subr.bf16.mxu0 0
    %688 = vmatpush2.bf16.msra.mxu0 0
    %689 = vmatprep.subr.bf16.mxu0 0
    %690 = vmatpush2.bf16.msra.mxu0 0
    %691 = vmatprep.subr.bf16.mxu0 0
    %692 = vmatpush2.bf16.msra.mxu0 0
    %693 = vmatprep.subr.bf16.mxu0 0
    %694 = vmatpush2.bf16.msra.mxu0 0
    %695 = vmatprep.subr.bf16.mxu0 0
    %696 = vmatpush2.bf16.msra.mxu0 0
    %697 = vmatprep.subr.bf16.mxu0 0
    %698 = vmatpush2.bf16.msra.mxu0 0
    %699 = vmatprep.subr.bf16.mxu0 0
    %700 = vmatpush2.bf16.msra.mxu0 0
    %701 = vmatprep.subr.bf16.mxu0 0
    %702 = vmatpush2.bf16.msra.mxu0 0
    %703 = vmatprep.mubr.bf16.mxu0 0
    %704 = vmatmul.mubr.bf16.gmra.mxu0 %v666
    %v705 = vpop.f32.mrf.mxu0
    %v706 = vadd.f32 0.0, %v705
    %v707 = vpop.f32.mrf.mxu0
    %v708 = vpop.f32.mrf.mxu0
    %v709 = vpop.f32.mrf.mxu0
    %710 = vdwg.mxu0
    %712 = vrot.lane.b32.xlu0 %v309, 120
    %v713 = vpop.permute.xlu0 %712
    %v715 = vsel %vm311, %v661, 0
    %v718 = vsel %vm435, %v713, 0
    %720 = vmatprep.subr.bf16.mxu0 0
    %721 = vmatpush1.bf16.msra.mxu0 0
    %722 = vmatprep.subr.bf16.mxu0 0
    %723 = vmatpush1.bf16.msra.mxu0 0
    %724 = vmatprep.subr.bf16.mxu0 0
    %725 = vmatpush1.bf16.msra.mxu0 0
    %726 = vmatprep.subr.bf16.mxu0 0
    %727 = vmatpush1.bf16.msra.mxu0 0
    %728 = vmatprep.subr.bf16.mxu0 0
    %729 = vmatpush1.bf16.msra.mxu0 0
    %730 = vmatprep.subr.bf16.mxu0 0
    %731 = vmatpush1.bf16.msra.mxu0 0
    %732 = vmatprep.subr.bf16.mxu0 0
    %733 = vmatpush1.bf16.msra.mxu0 0
    %734 = vmatprep.subr.bf16.mxu0 0
    %735 = vmatpush1.bf16.msra.mxu0 %v718
    %736 = vmatprep.subr.bf16.mxu0 0
    %737 = vmatpush2.bf16.msra.mxu0 0
    %738 = vmatprep.subr.bf16.mxu0 0
    %739 = vmatpush2.bf16.msra.mxu0 0
    %740 = vmatprep.subr.bf16.mxu0 0
    %741 = vmatpush2.bf16.msra.mxu0 0
    %742 = vmatprep.subr.bf16.mxu0 0
    %743 = vmatpush2.bf16.msra.mxu0 0
    %744 = vmatprep.subr.bf16.mxu0 0
    %745 = vmatpush2.bf16.msra.mxu0 0
    %746 = vmatprep.subr.bf16.mxu0 0
    %747 = vmatpush2.bf16.msra.mxu0 0
    %748 = vmatprep.subr.bf16.mxu0 0
    %749 = vmatpush2.bf16.msra.mxu0 0
    %750 = vmatprep.subr.bf16.mxu0 0
    %751 = vmatpush2.bf16.msra.mxu0 0
    %752 = vmatprep.mubr.bf16.mxu0 0
    %753 = vmatmul.mubr.bf16.gmra.mxu0 %v715
    %v754 = vpop.f32.mrf.mxu0
    %v755 = vadd.f32 0.0, %v754
    %v756 = vpop.f32.mrf.mxu0
    %v757 = vpop.f32.mrf.mxu0
    %v758 = vpop.f32.mrf.mxu0
    %759 = vdwg.mxu0
    %762 = vrot.lane.b32.xlu0 %v706, 8
    %v763 = vpop.permute.xlu0 %762
    %764 = vrot.lane.b32.xlu0 %v755, 8
    %v765 = vpop.permute.xlu0 %764
    %vm768 = vcmask 130112
    %769 = vst.msk [vmem:[#allocation2] sm:$0xff] %vm768, %v763
    %770 = vst.msk [vmem:[#allocation2 + $0x8] sm:$0xff] %vm768, %v765
    %s771 = scalar_lea.vmem %s7, 16
    %v772 = vld [vmem:[%s771] sm:$0xff]
    %773 = vrot.lane.b32.xlu0 %v304, 112
    %v774 = vpop.permute.xlu0 %773
    %775 = vrot.lane.b32.xlu0 %v306, 112
    %v776 = vpop.permute.xlu0 %775
    %v778 = vsel %vm311, %v774, 0
    %v781 = vsel %vm311, %v776, 0
    %783 = vmatprep.subr.bf16.mxu0 0
    %784 = vmatpush1.bf16.xpose.msra.mxu0 0
    %785 = vmatprep.subr.bf16.mxu0 0
    %786 = vmatpush1.bf16.xpose.msra.mxu0 0
    %787 = vmatprep.subr.bf16.mxu0 0
    %788 = vmatpush1.bf16.xpose.msra.mxu0 0
    %789 = vmatprep.subr.bf16.mxu0 0
    %790 = vmatpush1.bf16.xpose.msra.mxu0 0
    %791 = vmatprep.subr.bf16.mxu0 0
    %792 = vmatpush1.bf16.xpose.msra.mxu0 0
    %793 = vmatprep.subr.bf16.mxu0 0
    %794 = vmatpush1.bf16.xpose.msra.mxu0 0
    %795 = vmatprep.subr.bf16.mxu0 0
    %796 = vmatpush1.bf16.xpose.msra.mxu0 0
    %797 = vmatprep.subr.bf16.mxu0 0
    %798 = vmatpush1.bf16.xpose.msra.mxu0 %v781
    %799 = vmatprep.subr.bf16.mxu0 0
    %800 = vmatpush2.bf16.xpose.msra.mxu0 0
    %801 = vmatprep.subr.bf16.mxu0 0
    %802 = vmatpush2.bf16.xpose.msra.mxu0 0
    %803 = vmatprep.subr.bf16.mxu0 0
    %804 = vmatpush2.bf16.xpose.msra.mxu0 0
    %805 = vmatprep.subr.bf16.mxu0 0
    %806 = vmatpush2.bf16.xpose.msra.mxu0 0
    %807 = vmatprep.subr.bf16.mxu0 0
    %808 = vmatpush2.bf16.xpose.msra.mxu0 0
    %809 = vmatprep.subr.bf16.mxu0 0
    %810 = vmatpush2.bf16.xpose.msra.mxu0 0
    %811 = vmatprep.subr.bf16.mxu0 0
    %812 = vmatpush2.bf16.xpose.msra.mxu0 0
    %813 = vmatprep.subr.bf16.mxu0 0
    %814 = vmatpush2.bf16.xpose.msra.mxu0 0
    %815 = vmatprep.mubr.bf16.mxu0 0
    %816 = vmatmul.mubr.bf16.gmra.mxu0 %v778
    %v817 = vpop.f32.mrf.mxu0
    %v818 = vadd.f32 %v772, %v817
    %v819 = vpop.f32.mrf.mxu0
    %v820 = vpop.f32.mrf.mxu0
    %v821 = vpop.f32.mrf.mxu0
    %822 = vdwg.mxu0
    %823 = vrot.lane.b32.xlu0 %v305, 112
    %v824 = vpop.permute.xlu0 %823
    %825 = vrot.lane.b32.xlu0 %v307, 112
    %v826 = vpop.permute.xlu0 %825
    %v828 = vsel %vm311, %v824, 0
    %v831 = vsel %vm311, %v826, 0
    %833 = vmatprep.subr.bf16.mxu0 0
    %834 = vmatpush1.bf16.xpose.msra.mxu0 0
    %835 = vmatprep.subr.bf16.mxu0 0
    %836 = vmatpush1.bf16.xpose.msra.mxu0 0
    %837 = vmatprep.subr.bf16.mxu0 0
    %838 = vmatpush1.bf16.xpose.msra.mxu0 0
    %839 = vmatprep.subr.bf16.mxu0 0
    %840 = vmatpush1.bf16.xpose.msra.mxu0 0
    %841 = vmatprep.subr.bf16.mxu0 0
    %842 = vmatpush1.bf16.xpose.msra.mxu0 0
    %843 = vmatprep.subr.bf16.mxu0 0
    %844 = vmatpush1.bf16.xpose.msra.mxu0 0
    %845 = vmatprep.subr.bf16.mxu0 0
    %846 = vmatpush1.bf16.xpose.msra.mxu0 0
    %847 = vmatprep.subr.bf16.mxu0 0
    %848 = vmatpush1.bf16.xpose.msra.mxu0 %v831
    %849 = vmatprep.subr.bf16.mxu0 0
    %850 = vmatpush2.bf16.xpose.msra.mxu0 0
    %851 = vmatprep.subr.bf16.mxu0 0
    %852 = vmatpush2.bf16.xpose.msra.mxu0 0
    %853 = vmatprep.subr.bf16.mxu0 0
    %854 = vmatpush2.bf16.xpose.msra.mxu0 0
    %855 = vmatprep.subr.bf16.mxu0 0
    %856 = vmatpush2.bf16.xpose.msra.mxu0 0
    %857 = vmatprep.subr.bf16.mxu0 0
    %858 = vmatpush2.bf16.xpose.msra.mxu0 0
    %859 = vmatprep.subr.bf16.mxu0 0
    %860 = vmatpush2.bf16.xpose.msra.mxu0 0
    %861 = vmatprep.subr.bf16.mxu0 0
    %862 = vmatpush2.bf16.xpose.msra.mxu0 0
    %863 = vmatprep.subr.bf16.mxu0 0
    %864 = vmatpush2.bf16.xpose.msra.mxu0 0
    %865 = vmatprep.mubr.bf16.mxu0 0
    %866 = vmatmul.mubr.bf16.gmra.mxu0 %v828
    %v867 = vpop.f32.mrf.mxu0
    %v868 = vadd.f32 %v772, %v867
    %v869 = vpop.f32.mrf.mxu0
    %v870 = vpop.f32.mrf.mxu0
    %v871 = vpop.f32.mrf.mxu0
    %872 = vdwg.mxu0
    %v873 = vadd.f32 %v818, %v302
    %v874 = vadd.f32 %v868, %v303
    %v875 = vsel %vm311, %v873, -inf
    %876 = vmax.xlane.f32.xlu0 %v875
    %v877 = vpop.xlane.xlu0 %876
    %v878 = vsel %vm311, %v874, -inf
    %879 = vmax.xlane.f32.xlu0 %v878
    %v880 = vpop.xlane.xlu0 %879
    %v881 = vsub.f32 %v873, %v877
    %v882 = vsub.f32 %v874, %v880
    %v883 = vmul.f32 %v881, 1.442695
    %v884 = vpow.pop %v883
    %v885 = vmul.f32 %v882, 1.442695
    %v886 = vpow.pop %v885
    %v887 = vsel %vm311, %v884, 0.0
    %888 = vadd.xlane.f32.xlu0 %v887
    %v889 = vpop.xlane.xlu0 %888
    %v890 = vsel %vm311, %v886, 0.0
    %891 = vadd.xlane.f32.xlu0 %v890
    %v892 = vpop.xlane.xlu0 %891
    %v893 = vrcp.pop %v889
    %v894 = vrcp.pop %v892
    %v895 = vmul.f32 %v884, %v893
    %v896 = vmul.f32 %v886, %v894
    %s897 = scalar_lea.vmem [#allocation13], 16
    %898 = vst.msk [vmem:[%s897] sm:$0xff] %vm311, %v895
    %899 = vst.msk [vmem:[%s897 + $0x20] sm:$0xff] %vm311, %v896
    %v900 = vpack.c.bf16 %v895, %v895
    %v901 = vpack.c.bf16 %v896, %v896
    %902 = vrot.lane.b32.xlu0 %v308, 112
    %v903 = vpop.permute.xlu0 %902
    %v905 = vsel %vm311, %v900, 0
    %v908 = vsel %vm435, %v903, 0
    %910 = vmatprep.subr.bf16.mxu0 0
    %911 = vmatpush1.bf16.msra.mxu0 0
    %912 = vmatprep.subr.bf16.mxu0 0
    %913 = vmatpush1.bf16.msra.mxu0 0
    %914 = vmatprep.subr.bf16.mxu0 0
    %915 = vmatpush1.bf16.msra.mxu0 0
    %916 = vmatprep.subr.bf16.mxu0 0
    %917 = vmatpush1.bf16.msra.mxu0 0
    %918 = vmatprep.subr.bf16.mxu0 0
    %919 = vmatpush1.bf16.msra.mxu0 0
    %920 = vmatprep.subr.bf16.mxu0 0
    %921 = vmatpush1.bf16.msra.mxu0 0
    %922 = vmatprep.subr.bf16.mxu0 0
    %923 = vmatpush1.bf16.msra.mxu0 0
    %924 = vmatprep.subr.bf16.mxu0 0
    %925 = vmatpush1.bf16.msra.mxu0 %v908
    %926 = vmatprep.subr.bf16.mxu0 0
    %927 = vmatpush2.bf16.msra.mxu0 0
    %928 = vmatprep.subr.bf16.mxu0 0
    %929 = vmatpush2.bf16.msra.mxu0 0
    %930 = vmatprep.subr.bf16.mxu0 0
    %931 = vmatpush2.bf16.msra.mxu0 0
    %932 = vmatprep.subr.bf16.mxu0 0
    %933 = vmatpush2.bf16.msra.mxu0 0
    %934 = vmatprep.subr.bf16.mxu0 0
    %935 = vmatpush2.bf16.msra.mxu0 0
    %936 = vmatprep.subr.bf16.mxu0 0
    %937 = vmatpush2.bf16.msra.mxu0 0
    %938 = vmatprep.subr.bf16.mxu0 0
    %939 = vmatpush2.bf16.msra.mxu0 0
    %940 = vmatprep.subr.bf16.mxu0 0
    %941 = vmatpush2.bf16.msra.mxu0 0
    %942 = vmatprep.mubr.bf16.mxu0 0
    %943 = vmatmul.mubr.bf16.gmra.mxu0 %v905
    %v944 = vpop.f32.mrf.mxu0
    %v945 = vadd.f32 0.0, %v944
    %v946 = vpop.f32.mrf.mxu0
    %v947 = vpop.f32.mrf.mxu0
    %v948 = vpop.f32.mrf.mxu0
    %949 = vdwg.mxu0
    %950 = vrot.lane.b32.xlu0 %v309, 112
    %v951 = vpop.permute.xlu0 %950
    %v953 = vsel %vm311, %v901, 0
    %v956 = vsel %vm435, %v951, 0
    %958 = vmatprep.subr.bf16.mxu0 0
    %959 = vmatpush1.bf16.msra.mxu0 0
    %960 = vmatprep.subr.bf16.mxu0 0
    %961 = vmatpush1.bf16.msra.mxu0 0
    %962 = vmatprep.subr.bf16.mxu0 0
    %963 = vmatpush1.bf16.msra.mxu0 0
    %964 = vmatprep.subr.bf16.mxu0 0
    %965 = vmatpush1.bf16.msra.mxu0 0
    %966 = vmatprep.subr.bf16.mxu0 0
    %967 = vmatpush1.bf16.msra.mxu0 0
    %968 = vmatprep.subr.bf16.mxu0 0
    %969 = vmatpush1.bf16.msra.mxu0 0
    %970 = vmatprep.subr.bf16.mxu0 0
    %971 = vmatpush1.bf16.msra.mxu0 0
    %972 = vmatprep.subr.bf16.mxu0 0
    %973 = vmatpush1.bf16.msra.mxu0 %v956
    %974 = vmatprep.subr.bf16.mxu0 0
    %975 = vmatpush2.bf16.msra.mxu0 0
    %976 = vmatprep.subr.bf16.mxu0 0
    %977 = vmatpush2.bf16.msra.mxu0 0
    %978 = vmatprep.subr.bf16.mxu0 0
    %979 = vmatpush2.bf16.msra.mxu0 0
    %980 = vmatprep.subr.bf16.mxu0 0
    %981 = vmatpush2.bf16.msra.mxu0 0
    %982 = vmatprep.subr.bf16.mxu0 0
    %983 = vmatpush2.bf16.msra.mxu0 0
    %984 = vmatprep.subr.bf16.mxu0 0
    %985 = vmatpush2.bf16.msra.mxu0 0
    %986 = vmatprep.subr.bf16.mxu0 0
    %987 = vmatpush2.bf16.msra.mxu0 0
    %988 = vmatprep.subr.bf16.mxu0 0
    %989 = vmatpush2.bf16.msra.mxu0 0
    %990 = vmatprep.mubr.bf16.mxu0 0
    %991 = vmatmul.mubr.bf16.gmra.mxu0 %v953
    %v992 = vpop.f32.mrf.mxu0
    %v993 = vadd.f32 0.0, %v992
    %v994 = vpop.f32.mrf.mxu0
    %v995 = vpop.f32.mrf.mxu0
    %v996 = vpop.f32.mrf.mxu0
    %997 = vdwg.mxu0
    %1000 = vrot.lane.b32.xlu0 %v945, 16
    %v1001 = vpop.permute.xlu0 %1000
    %1002 = vrot.lane.b32.xlu0 %v993, 16
    %v1003 = vpop.permute.xlu0 %1002
    %vm1006 = vcmask 195712
    %1007 = vst.msk [vmem:[#allocation2] sm:$0xff] %vm1006, %v1001
    %1008 = vst.msk [vmem:[#allocation2 + $0x8] sm:$0xff] %vm1006, %v1003
    %s1009 = scalar_lea.vmem %s7, 24
    %v1010 = vld [vmem:[%s1009] sm:$0xff]
    %1011 = vrot.lane.b32.xlu0 %v304, 104
    %v1012 = vpop.permute.xlu0 %1011
    %1013 = vrot.lane.b32.xlu0 %v306, 104
    %v1014 = vpop.permute.xlu0 %1013
    %v1016 = vsel %vm311, %v1012, 0
    %v1019 = vsel %vm311, %v1014, 0
    %1021 = vmatprep.subr.bf16.mxu0 0
    %1022 = vmatpush1.bf16.xpose.msra.mxu0 0
    %1023 = vmatprep.subr.bf16.mxu0 0
    %1024 = vmatpush1.bf16.xpose.msra.mxu0 0
    %1025 = vmatprep.subr.bf16.mxu0 0
    %1026 = vmatpush1.bf16.xpose.msra.mxu0 0
    %1027 = vmatprep.subr.bf16.mxu0 0
    %1028 = vmatpush1.bf16.xpose.msra.mxu0 0
    %1029 = vmatprep.subr.bf16.mxu0 0
    %1030 = vmatpush1.bf16.xpose.msra.mxu0 0
    %1031 = vmatprep.subr.bf16.mxu0 0
    %1032 = vmatpush1.bf16.xpose.msra.mxu0 0
    %1033 = vmatprep.subr.bf16.mxu0 0
    %1034 = vmatpush1.bf16.xpose.msra.mxu0 0
    %1035 = vmatprep.subr.bf16.mxu0 0
    %1036 = vmatpush1.bf16.xpose.msra.mxu0 %v1019
    %1037 = vmatprep.subr.bf16.mxu0 0
    %1038 = vmatpush2.bf16.xpose.msra.mxu0 0
    %1039 = vmatprep.subr.bf16.mxu0 0
    %1040 = vmatpush2.bf16.xpose.msra.mxu0 0
    %1041 = vmatprep.subr.bf16.mxu0 0
    %1042 = vmatpush2.bf16.xpose.msra.mxu0 0
    %1043 = vmatprep.subr.bf16.mxu0 0
    %1044 = vmatpush2.bf16.xpose.msra.mxu0 0
    %1045 = vmatprep.subr.bf16.mxu0 0
    %1046 = vmatpush2.bf16.xpose.msra.mxu0 0
    %1047 = vmatprep.subr.bf16.mxu0 0
    %1048 = vmatpush2.bf16.xpose.msra.mxu0 0
    %1049 = vmatprep.subr.bf16.mxu0 0
    %1050 = vmatpush2.bf16.xpose.msra.mxu0 0
    %1051 = vmatprep.subr.bf16.mxu0 0
    %1052 = vmatpush2.bf16.xpose.msra.mxu0 0
    %1053 = vmatprep.mubr.bf16.mxu0 0
    %1054 = vmatmul.mubr.bf16.gmra.mxu0 %v1016
    %v1055 = vpop.f32.mrf.mxu0
    %v1056 = vadd.f32 %v1010, %v1055
    %v1057 = vpop.f32.mrf.mxu0
    %v1058 = vpop.f32.mrf.mxu0
    %v1059 = vpop.f32.mrf.mxu0
    %1060 = vdwg.mxu0
    %1061 = vrot.lane.b32.xlu0 %v305, 104
    %v1062 = vpop.permute.xlu0 %1061
    %1063 = vrot.lane.b32.xlu0 %v307, 104
    %v1064 = vpop.permute.xlu0 %1063
    %v1066 = vsel %vm311, %v1062, 0
    %v1069 = vsel %vm311, %v1064, 0
    %1071 = vmatprep.subr.bf16.mxu0 0
    %1072 = vmatpush1.bf16.xpose.msra.mxu0 0
    %1073 = vmatprep.subr.bf16.mxu0 0
    %1074 = vmatpush1.bf16.xpose.msra.mxu0 0
    %1075 = vmatprep.subr.bf16.mxu0 0
    %1076 = vmatpush1.bf16.xpose.msra.mxu0 0
    %1077 = vmatprep.subr.bf16.mxu0 0
    %1078 = vmatpush1.bf16.xpose.msra.mxu0 0
    %1079 = vmatprep.subr.bf16.mxu0 0
    %1080 = vmatpush1.bf16.xpose.msra.mxu0 0
    %1081 = vmatprep.subr.bf16.mxu0 0
    %1082 = vmatpush1.bf16.xpose.msra.mxu0 0
    %1083 = vmatprep.subr.bf16.mxu0 0
    %1084 = vmatpush1.bf16.xpose.msra.mxu0 0
    %1085 = vmatprep.subr.bf16.mxu0 0
    %1086 = vmatpush1.bf16.xpose.msra.mxu0 %v1069
    %1087 = vmatprep.subr.bf16.mxu0 0
    %1088 = vmatpush2.bf16.xpose.msra.mxu0 0
    %1089 = vmatprep.subr.bf16.mxu0 0
    %1090 = vmatpush2.bf16.xpose.msra.mxu0 0
    %1091 = vmatprep.subr.bf16.mxu0 0
    %1092 = vmatpush2.bf16.xpose.msra.mxu0 0
    %1093 = vmatprep.subr.bf16.mxu0 0
    %1094 = vmatpush2.bf16.xpose.msra.mxu0 0
    %1095 = vmatprep.subr.bf16.mxu0 0
    %1096 = vmatpush2.bf16.xpose.msra.mxu0 0
    %1097 = vmatprep.subr.bf16.mxu0 0
    %1098 = vmatpush2.bf16.xpose.msra.mxu0 0
    %1099 = vmatprep.subr.bf16.mxu0 0
    %1100 = vmatpush2.bf16.xpose.msra.mxu0 0
    %1101 = vmatprep.subr.bf16.mxu0 0
    %1102 = vmatpush2.bf16.xpose.msra.mxu0 0
    %1103 = vmatprep.mubr.bf16.mxu0 0
    %1104 = vmatmul.mubr.bf16.gmra.mxu0 %v1066
    %v1105 = vpop.f32.mrf.mxu0
    %v1106 = vadd.f32 %v1010, %v1105
    %v1107 = vpop.f32.mrf.mxu0
    %v1108 = vpop.f32.mrf.mxu0
    %v1109 = vpop.f32.mrf.mxu0
    %1110 = vdwg.mxu0
    %v1111 = vadd.f32 %v1056, %v302
    %v1112 = vadd.f32 %v1106, %v303
    %v1113 = vsel %vm311, %v1111, -inf
    %1114 = vmax.xlane.f32.xlu0 %v1113
    %v1115 = vpop.xlane.xlu0 %1114
    %v1116 = vsel %vm311, %v1112, -inf
    %1117 = vmax.xlane.f32.xlu0 %v1116
    %v1118 = vpop.xlane.xlu0 %1117
    %v1119 = vsub.f32 %v1111, %v1115
    %v1120 = vsub.f32 %v1112, %v1118
    %v1121 = vmul.f32 %v1119, 1.442695
    %v1122 = vpow.pop %v1121
    %v1123 = vmul.f32 %v1120, 1.442695
    %v1124 = vpow.pop %v1123
    %v1125 = vsel %vm311, %v1122, 0.0
    %1126 = vadd.xlane.f32.xlu0 %v1125
    %v1127 = vpop.xlane.xlu0 %1126
    %v1128 = vsel %vm311, %v1124, 0.0
    %1129 = vadd.xlane.f32.xlu0 %v1128
    %v1130 = vpop.xlane.xlu0 %1129
    %v1131 = vrcp.pop %v1127
    %v1132 = vrcp.pop %v1130
    %v1133 = vmul.f32 %v1122, %v1131
    %v1134 = vmul.f32 %v1124, %v1132
    %s1135 = scalar_lea.vmem [#allocation13], 24
    %1136 = vst.msk [vmem:[%s1135] sm:$0xff] %vm311, %v1133
    %1137 = vst.msk [vmem:[%s1135 + $0x20] sm:$0xff] %vm311, %v1134
    %v1138 = vpack.c.bf16 %v1133, %v1133
    %v1139 = vpack.c.bf16 %v1134, %v1134
    %1140 = vrot.lane.b32.xlu0 %v308, 104
    %v1141 = vpop.permute.xlu0 %1140
    %v1143 = vsel %vm311, %v1138, 0
    %v1146 = vsel %vm435, %v1141, 0
    %1148 = vmatprep.subr.bf16.mxu0 0
    %1149 = vmatpush1.bf16.msra.mxu0 0
    %1150 = vmatprep.subr.bf16.mxu0 0
    %1151 = vmatpush1.bf16.msra.mxu0 0
    %1152 = vmatprep.subr.bf16.mxu0 0
    %1153 = vmatpush1.bf16.msra.mxu0 0
    %1154 = vmatprep.subr.bf16.mxu0 0
    %1155 = vmatpush1.bf16.msra.mxu0 0
    %1156 = vmatprep.subr.bf16.mxu0 0
    %1157 = vmatpush1.bf16.msra.mxu0 0
    %1158 = vmatprep.subr.bf16.mxu0 0
    %1159 = vmatpush1.bf16.msra.mxu0 0
    %1160 = vmatprep.subr.bf16.mxu0 0
    %1161 = vmatpush1.bf16.msra.mxu0 0
    %1162 = vmatprep.subr.bf16.mxu0 0
    %1163 = vmatpush1.bf16.msra.mxu0 %v1146
    %1164 = vmatprep.subr.bf16.mxu0 0
    %1165 = vmatpush2.bf16.msra.mxu0 0
    %1166 = vmatprep.subr.bf16.mxu0 0
    %1167 = vmatpush2.bf16.msra.mxu0 0
    %1168 = vmatprep.subr.bf16.mxu0 0
    %1169 = vmatpush2.bf16.msra.mxu0 0
    %1170 = vmatprep.subr.bf16.mxu0 0
    %1171 = vmatpush2.bf16.msra.mxu0 0
    %1172 = vmatprep.subr.bf16.mxu0 0
    %1173 = vmatpush2.bf16.msra.mxu0 0
    %1174 = vmatprep.subr.bf16.mxu0 0
    %1175 = vmatpush2.bf16.msra.mxu0 0
    %1176 = vmatprep.subr.bf16.mxu0 0
    %1177 = vmatpush2.bf16.msra.mxu0 0
    %1178 = vmatprep.subr.bf16.mxu0 0
    %1179 = vmatpush2.bf16.msra.mxu0 0
    %1180 = vmatprep.mubr.bf16.mxu0 0
    %1181 = vmatmul.mubr.bf16.gmra.mxu0 %v1143
    %v1182 = vpop.f32.mrf.mxu0
    %v1183 = vadd.f32 0.0, %v1182
    %v1184 = vpop.f32.mrf.mxu0
    %v1185 = vpop.f32.mrf.mxu0
    %v1186 = vpop.f32.mrf.mxu0
    %1187 = vdwg.mxu0
    %1188 = vrot.lane.b32.xlu0 %v309, 104
    %v1189 = vpop.permute.xlu0 %1188
    %v1191 = vsel %vm311, %v1139, 0
    %v1194 = vsel %vm435, %v1189, 0
    %1196 = vmatprep.subr.bf16.mxu0 0
    %1197 = vmatpush1.bf16.msra.mxu0 0
    %1198 = vmatprep.subr.bf16.mxu0 0
    %1199 = vmatpush1.bf16.msra.mxu0 0
    %1200 = vmatprep.subr.bf16.mxu0 0
    %1201 = vmatpush1.bf16.msra.mxu0 0
    %1202 = vmatprep.subr.bf16.mxu0 0
    %1203 = vmatpush1.bf16.msra.mxu0 0
    %1204 = vmatprep.subr.bf16.mxu0 0
    %1205 = vmatpush1.bf16.msra.mxu0 0
    %1206 = vmatprep.subr.bf16.mxu0 0
    %1207 = vmatpush1.bf16.msra.mxu0 0
    %1208 = vmatprep.subr.bf16.mxu0 0
    %1209 = vmatpush1.bf16.msra.mxu0 0
    %1210 = vmatprep.subr.bf16.mxu0 0
    %1211 = vmatpush1.bf16.msra.mxu0 %v1194
    %1212 = vmatprep.subr.bf16.mxu0 0
    %1213 = vmatpush2.bf16.msra.mxu0 0
    %1214 = vmatprep.subr.bf16.mxu0 0
    %1215 = vmatpush2.bf16.msra.mxu0 0
    %1216 = vmatprep.subr.bf16.mxu0 0
    %1217 = vmatpush2.bf16.msra.mxu0 0
    %1218 = vmatprep.subr.bf16.mxu0 0
    %1219 = vmatpush2.bf16.msra.mxu0 0
    %1220 = vmatprep.subr.bf16.mxu0 0
    %1221 = vmatpush2.bf16.msra.mxu0 0
    %1222 = vmatprep.subr.bf16.mxu0 0
    %1223 = vmatpush2.bf16.msra.mxu0 0
    %1224 = vmatprep.subr.bf16.mxu0 0
    %1225 = vmatpush2.bf16.msra.mxu0 0
    %1226 = vmatprep.subr.bf16.mxu0 0
    %1227 = vmatpush2.bf16.msra.mxu0 0
    %1228 = vmatprep.mubr.bf16.mxu0 0
    %1229 = vmatmul.mubr.bf16.gmra.mxu0 %v1191
    %v1230 = vpop.f32.mrf.mxu0
    %v1231 = vadd.f32 0.0, %v1230
    %v1232 = vpop.f32.mrf.mxu0
    %v1233 = vpop.f32.mrf.mxu0
    %v1234 = vpop.f32.mrf.mxu0
    %1235 = vdwg.mxu0
    %1238 = vrot.lane.b32.xlu0 %v1183, 24
    %v1239 = vpop.permute.xlu0 %1238
    %1240 = vrot.lane.b32.xlu0 %v1231, 24
    %v1241 = vpop.permute.xlu0 %1240
    %vm1244 = vcmask 261312
    %1245 = vst.msk [vmem:[#allocation2] sm:$0xff] %vm1244, %v1239
    %1246 = vst.msk [vmem:[#allocation2 + $0x8] sm:$0xff] %vm1244, %v1241
    %v1247 = vld [vmem:[#allocation2] sm:$0xff]
    %v1248 = vld [vmem:[#allocation2 + $0x8] sm:$0xff]
    %v1249 = vpack.c.bf16 %v1248, %v1247
    %v1250 = vld [vmem:[#allocation9] sm:$0xf]
    %v1251 = vld [vmem:[#allocation9 + $0x4] sm:$0xf]
    %v1252 = vld [vmem:[#allocation9 + $0x8] sm:$0xf]
    %v1253 = vld [vmem:[#allocation9 + $0xc] sm:$0xf]
    %v1258 = vunpack.c.l.b16 %v1250
    %v1259 = vunpack.c.l.b16 %v1251
    %v1260 = vunpack.c.l.b16 %v1252
    %v1261 = vunpack.c.l.b16 %v1253
    %v1262 = vpack.c.b16 %v1259, %v1258
    %v1263 = vpack.c.b16 %v1261, %v1260
    %v1267 = vsel %vm143, %v1249, 0
    %1269 = vmatprep.subr.bf16.mxu0 0
    %1270 = vmatpush1.bf16.msra.mxu0 0
    %1271 = vmatprep.subr.bf16.mxu0 0
    %1272 = vmatpush1.bf16.msra.mxu0 0
    %1273 = vmatprep.subr.bf16.mxu0 0
    %1274 = vmatpush1.bf16.msra.mxu0 0
    %1275 = vmatprep.subr.bf16.mxu0 0
    %1276 = vmatpush1.bf16.msra.mxu0 0
    %1277 = vmatprep.subr.bf16.mxu0 0
    %1278 = vmatpush1.bf16.msra.mxu0 0
    %1279 = vmatprep.subr.bf16.mxu0 0
    %1280 = vmatpush1.bf16.msra.mxu0 0
    %1281 = vmatprep.subr.bf16.mxu0 0
    %1282 = vmatpush1.bf16.msra.mxu0 %v1263
    %1283 = vmatprep.subr.bf16.mxu0 0
    %1284 = vmatpush1.bf16.msra.mxu0 %v1262
    %1285 = vmatprep.subr.bf16.mxu0 0
    %1286 = vmatpush2.bf16.msra.mxu0 0
    %1287 = vmatprep.subr.bf16.mxu0 0
    %1288 = vmatpush2.bf16.msra.mxu0 0
    %1289 = vmatprep.subr.bf16.mxu0 0
    %1290 = vmatpush2.bf16.msra.mxu0 0
    %1291 = vmatprep.subr.bf16.mxu0 0
    %1292 = vmatpush2.bf16.msra.mxu0 0
    %1293 = vmatprep.subr.bf16.mxu0 0
    %1294 = vmatpush2.bf16.msra.mxu0 0
    %1295 = vmatprep.subr.bf16.mxu0 0
    %1296 = vmatpush2.bf16.msra.mxu0 0
    %1297 = vmatprep.subr.bf16.mxu0 0
    %1298 = vmatpush2.bf16.msra.mxu0 0
    %1299 = vmatprep.subr.bf16.mxu0 0
    %1300 = vmatpush2.bf16.msra.mxu0 0
    %1301 = vmatprep.mubr.bf16.mxu0 0
    %1302 = vmatmul.mubr.bf16.gmra.mxu0 %v1267
    %v1303 = vpop.f32.mrf.mxu0
    %v1304 = vadd.f32 %v124, %v1303
    %v1305 = vpop.f32.mrf.mxu0
    %v1306 = vpop.f32.mrf.mxu0
    %v1307 = vadd.f32 %v125, %v1306
    %v1308 = vpop.f32.mrf.mxu0
    %1309 = vdwg.mxu0
    %v1310 = vsel %vm143, %v1304, 0.0
    %1311 = vadd.xlane.f32.xlu0 %v1310
    %v1312 = vpop.xlane.xlu0 %1311
    %v1313 = vsel %vm143, %v1307, 0.0
    %1314 = vadd.xlane.f32.xlu0 %v1313
    %v1315 = vpop.xlane.xlu0 %1314
    %v1316 = vrcp.pop 32.0
    %v1317 = vmul.f32 %v1312, %v1316
    %v1318 = vmul.f32 %v1315, %v1316
    %v1319 = vsub.f32 %v1304, %v1317
    %v1320 = vsub.f32 %v1307, %v1318
    %v1321 = vmul.f32 %v1319, %v1319
    %v1322 = vmul.f32 %v1320, %v1320
    %v1323 = vsel %vm143, %v1321, 0.0
    %1324 = vadd.xlane.f32.xlu0 %v1323
    %v1325 = vpop.xlane.xlu0 %1324
    %v1326 = vsel %vm143, %v1322, 0.0
    %1327 = vadd.xlane.f32.xlu0 %v1326
    %v1328 = vpop.xlane.xlu0 %1327
    %v1329 = vmul.f32 %v1325, %v1316
    %v1330 = vmul.f32 %v1328, %v1316
    %v1331 = vadd.f32 %v1329, 1e-06
    %v1332 = vadd.f32 %v1330, 1e-06
    %v1333 = vrsqrt.pop %v1331
    %v1334 = vrsqrt.pop %v1332
    %v1335 = vmul.f32 %v1319, %v1333
    %v1336 = vmul.f32 %v1320, %v1334
    %v1337 = vld [vmem:[%s8] sm:$0x1]
    %v1339 = vlaneseq
    %v1340 = vshrl.u32 %v1339, 7
    %v1341 = vsub.s32 0, %v1340
    %v1342 = vrot.slane %v1337, %v1341
    %v1344 = vmul.f32 %v1335, %v1342
    %v1345 = vmul.f32 %v1336, %v1342
    %v1346 = vld [vmem:[#allocation11] sm:$0x1]
    %v1348 = vlaneseq
    %v1349 = vshrl.u32 %v1348, 7
    %v1350 = vsub.s32 0, %v1349
    %v1351 = vrot.slane %v1346, %v1350
    %v1353 = vadd.f32 %v1344, %v1351
    %v1354 = vadd.f32 %v1345, %v1351
    %v1355 = vld [vmem:[%s2] sm:$0xff]
    %v1356 = vld [vmem:[%s2 + $0x8] sm:$0xff]
    %1358 = vset.pattern.permute.xlu0 0
    %1359 = vperm.xlu0 %1358, %v1355
    %v1360 = vpop.permute.xlu0 %1359
    %1363 = vset.pattern.permute.xlu0 0
    %1364 = vperm.xlu0 %1363, %v1356
    %v1365 = vpop.permute.xlu0 %1364
    %v1367 = vmul.f32 %v1353, %v1360
    %v1368 = vmul.f32 %v1354, %v1365
    %v1369 = vpack.c.bf16 %v1368, %v1367
    %v1370 = vld [vmem:[%s10] sm:$0xf]
    %v1371 = vld [vmem:[%s10 + $0x4] sm:$0xf]
    %v1372 = vld [vmem:[%s10 + $0x8] sm:$0xf]
    %v1373 = vld [vmem:[%s10 + $0xc] sm:$0xf]
    %v1374 = vld [vmem:[%s11] sm:$0x1]
    %v1376 = vlaneseq
    %v1377 = vshrl.u32 %v1376, 7
    %v1378 = vsub.s32 0, %v1377
    %v1379 = vrot.slane %v1374, %v1378
    %v1385 = vunpack.c.l.b16 %v1370
    %v1386 = vunpack.c.l.b16 %v1371
    %v1387 = vunpack.c.l.b16 %v1372
    %v1388 = vunpack.c.l.b16 %v1373
    %v1389 = vpack.c.b16 %v1386, %v1385
    %v1390 = vpack.c.b16 %v1388, %v1387
    %v1394 = vsel %vm143, %v1369, 0
    %1396 = vmatprep.subr.bf16.mxu0 0
    %1397 = vmatpush1.bf16.msra.mxu0 0
    %1398 = vmatprep.subr.bf16.mxu0 0
    %1399 = vmatpush1.bf16.msra.mxu0 0
    %1400 = vmatprep.subr.bf16.mxu0 0
    %1401 = vmatpush1.bf16.msra.mxu0 0
    %1402 = vmatprep.subr.bf16.mxu0 0
    %1403 = vmatpush1.bf16.msra.mxu0 0
    %1404 = vmatprep.subr.bf16.mxu0 0
    %1405 = vmatpush1.bf16.msra.mxu0 0
    %1406 = vmatprep.subr.bf16.mxu0 0
    %1407 = vmatpush1.bf16.msra.mxu0 0
    %1408 = vmatprep.subr.bf16.mxu0 0
    %1409 = vmatpush1.bf16.msra.mxu0 %v1390
    %1410 = vmatprep.subr.bf16.mxu0 0
    %1411 = vmatpush1.bf16.msra.mxu0 %v1389
    %1412 = vmatprep.subr.bf16.mxu0 0
    %1413 = vmatpush2.bf16.msra.mxu0 0
    %1414 = vmatprep.subr.bf16.mxu0 0
    %1415 = vmatpush2.bf16.msra.mxu0 0
    %1416 = vmatprep.subr.bf16.mxu0 0
    %1417 = vmatpush2.bf16.msra.mxu0 0
    %1418 = vmatprep.subr.bf16.mxu0 0
    %1419 = vmatpush2.bf16.msra.mxu0 0
    %1420 = vmatprep.subr.bf16.mxu0 0
    %1421 = vmatpush2.bf16.msra.mxu0 0
    %1422 = vmatprep.subr.bf16.mxu0 0
    %1423 = vmatpush2.bf16.msra.mxu0 0
    %1424 = vmatprep.subr.bf16.mxu0 0
    %1425 = vmatpush2.bf16.msra.mxu0 0
    %1426 = vmatprep.subr.bf16.mxu0 0
    %1427 = vmatpush2.bf16.msra.mxu0 0
    %1428 = vmatprep.mubr.bf16.mxu0 0
    %1429 = vmatmul.mubr.bf16.gmra.mxu0 %v1394
    %v1430 = vpop.f32.mrf.mxu0
    %v1431 = vadd.f32 %v1379, %v1430
    %v1432 = vpop.f32.mrf.mxu0
    %v1433 = vpop.f32.mrf.mxu0
    %v1434 = vadd.f32 %v1379, %v1433
    %v1435 = vpop.f32.mrf.mxu0
    %1436 = vdwg.mxu0
    %v1437 = vmax.f32 %v1431, 0.0
    %v1438 = vmax.f32 %v1434, 0.0
    %v1439 = vpack.c.bf16 %v1438, %v1437
    %v1440 = vld [vmem:[%s12] sm:$0xf]
    %v1441 = vld [vmem:[%s12 + $0x4] sm:$0xf]
    %v1442 = vld [vmem:[%s12 + $0x8] sm:$0xf]
    %v1443 = vld [vmem:[%s12 + $0xc] sm:$0xf]
    %v1444 = vld [vmem:[%s12 + $0x10] sm:$0xf]
    %v1445 = vld [vmem:[%s12 + $0x14] sm:$0xf]
    %v1446 = vld [vmem:[%s12 + $0x18] sm:$0xf]
    %v1447 = vld [vmem:[%s12 + $0x1c] sm:$0xf]
    %v1448 = vld [vmem:[%s13] sm:$0x1]
    %v1450 = vlaneseq
    %v1451 = vshrl.u32 %v1450, 7
    %v1452 = vsub.s32 0, %v1451
    %v1453 = vrot.slane %v1448, %v1452
    %v1463 = vunpack.c.l.b16 %v1440
    %v1464 = vunpack.c.l.b16 %v1441
    %v1465 = vunpack.c.l.b16 %v1442
    %v1466 = vunpack.c.l.b16 %v1443
    %v1467 = vunpack.c.l.b16 %v1444
    %v1468 = vunpack.c.l.b16 %v1445
    %v1469 = vunpack.c.l.b16 %v1446
    %v1470 = vunpack.c.l.b16 %v1447
    %v1471 = vpack.c.b16 %v1464, %v1463
    %v1472 = vpack.c.b16 %v1466, %v1465
    %v1473 = vpack.c.b16 %v1468, %v1467
    %v1474 = vpack.c.b16 %v1470, %v1469
    %vm1479 = vcmask 523264
    %v1481 = vsel %vm1479, %v1439, 0
    %1483 = vmatprep.subr.bf16.mxu0 0
    %1484 = vmatpush1.bf16.msra.mxu0 0
    %1485 = vmatprep.subr.bf16.mxu0 0
    %1486 = vmatpush1.bf16.msra.mxu0 0
    %1487 = vmatprep.subr.bf16.mxu0 0
    %1488 = vmatpush1.bf16.msra.mxu0 0
    %1489 = vmatprep.subr.bf16.mxu0 0
    %1490 = vmatpush1.bf16.msra.mxu0 0
    %1491 = vmatprep.subr.bf16.mxu0 0
    %1492 = vmatpush1.bf16.msra.mxu0 %v1474
    %1493 = vmatprep.subr.bf16.mxu0 0
    %1494 = vmatpush1.bf16.msra.mxu0 %v1473
    %1495 = vmatprep.subr.bf16.mxu0 0
    %1496 = vmatpush1.bf16.msra.mxu0 %v1472
    %1497 = vmatprep.subr.bf16.mxu0 0
    %1498 = vmatpush1.bf16.msra.mxu0 %v1471
    %1499 = vmatprep.subr.bf16.mxu0 0
    %1500 = vmatpush2.bf16.msra.mxu0 0
    %1501 = vmatprep.subr.bf16.mxu0 0
    %1502 = vmatpush2.bf16.msra.mxu0 0
    %1503 = vmatprep.subr.bf16.mxu0 0
    %1504 = vmatpush2.bf16.msra.mxu0 0
    %1505 = vmatprep.subr.bf16.mxu0 0
    %1506 = vmatpush2.bf16.msra.mxu0 0
    %1507 = vmatprep.subr.bf16.mxu0 0
    %1508 = vmatpush2.bf16.msra.mxu0 0
    %1509 = vmatprep.subr.bf16.mxu0 0
    %1510 = vmatpush2.bf16.msra.mxu0 0
    %1511 = vmatprep.subr.bf16.mxu0 0
    %1512 = vmatpush2.bf16.msra.mxu0 0
    %1513 = vmatprep.subr.bf16.mxu0 0
    %1514 = vmatpush2.bf16.msra.mxu0 0
    %1515 = vmatprep.mubr.bf16.mxu0 0
    %1516 = vmatmul.mubr.bf16.gmra.mxu0 %v1481
    %v1517 = vpop.f32.mrf.mxu0
    %v1518 = vadd.f32 %v1453, %v1517
    %v1519 = vpop.f32.mrf.mxu0
    %v1520 = vpop.f32.mrf.mxu0
    %v1521 = vadd.f32 %v1453, %v1520
    %v1522 = vpop.f32.mrf.mxu0
    %1523 = vdwg.mxu0
    %v1524 = vadd.f32 %v1518, %v1367
    %v1525 = vadd.f32 %v1521, %v1368
    %v1526 = vsel %vm143, %v1524, 0.0
    %1527 = vadd.xlane.f32.xlu0 %v1526
    %v1528 = vpop.xlane.xlu0 %1527
    %v1529 = vsel %vm143, %v1525, 0.0
    %1530 = vadd.xlane.f32.xlu0 %v1529
    %v1531 = vpop.xlane.xlu0 %1530
    %v1532 = vmul.f32 %v1528, %v1316
    %v1533 = vmul.f32 %v1531, %v1316
    %v1534 = vsub.f32 %v1524, %v1532
    %v1535 = vsub.f32 %v1525, %v1533
    %v1536 = vmul.f32 %v1534, %v1534
    %v1537 = vmul.f32 %v1535, %v1535
    %v1538 = vsel %vm143, %v1536, 0.0
    %1539 = vadd.xlane.f32.xlu0 %v1538
    %v1540 = vpop.xlane.xlu0 %1539
    %v1541 = vsel %vm143, %v1537, 0.0
    %1542 = vadd.xlane.f32.xlu0 %v1541
    %v1543 = vpop.xlane.xlu0 %1542
    %v1544 = vmul.f32 %v1540, %v1316
    %v1545 = vmul.f32 %v1543, %v1316
    %v1546 = vadd.f32 %v1544, 1e-06
    %v1547 = vadd.f32 %v1545, 1e-06
    %v1548 = vrsqrt.pop %v1546
    %v1549 = vrsqrt.pop %v1547
    %v1550 = vmul.f32 %v1534, %v1548
    %v1551 = vmul.f32 %v1535, %v1549
    %v1552 = vld [vmem:[%s14] sm:$0x1]
    %v1554 = vlaneseq
    %v1555 = vshrl.u32 %v1554, 7
    %v1556 = vsub.s32 0, %v1555
    %v1557 = vrot.slane %v1552, %v1556
    %v1559 = vmul.f32 %v1550, %v1557
    %v1560 = vmul.f32 %v1551, %v1557
    %v1561 = vld [vmem:[%s15] sm:$0x1]
    %v1563 = vlaneseq
    %v1564 = vshrl.u32 %v1563, 7
    %v1565 = vsub.s32 0, %v1564
    %v1566 = vrot.slane %v1561, %v1565
    %v1568 = vadd.f32 %v1559, %v1566
    %v1569 = vadd.f32 %v1560, %v1566
    %v1570 = vmul.f32 %v1568, %v1360
    %v1571 = vmul.f32 %v1569, %v1365
    %1572 = vst.msk [vmem:[#allocation12] sm:$0xff] %vm143, %v1570
    %1573 = vst.msk [vmem:[#allocation12 + $0x8] sm:$0xff] %vm143, %v1571
    // Predicated region
    $region86: #{tpu_custom_call.1} parent=1 // pred_check
      _
    $region87: #{tpu_custom_call.1} parent=1 // pred_check_branch
      %1575 = sbr.rel (0) target = $region89
    $region88: #{tpu_custom_call.1} parent=1 // pred_region
      %s1577 = ssub.s32 256, 256
      %1578 = vsyncadd [#allocation5], %s1577
      %s1579 = sshll.u32 [#allocation12], 4
      %s1580 = int_to_ptr.vmem [resolvable:$true] %s1579
      %1585 = dma.vmem_to_hbm [thread:$0]  %s1580, 256, %s16, [#allocation5], 128, 128, 8
    $region89: #{tpu_custom_call.1} parent=1 // pred_fallthru
      _
    // Predicated region
    $region90: #{tpu_custom_call.1} parent=1 // pred_check
      _
    $region91: #{tpu_custom_call.1} parent=1 // pred_check_branch
      %1587 = sbr.rel (0) target = $region93
    $region92: #{tpu_custom_call.1} parent=1 // pred_region
      %s1589 = ssub.s32 1024, 1024
      %1590 = vsyncadd [#allocation14], %s1589
      %s1591 = sshll.u32 [#allocation13], 4
      %s1592 = int_to_ptr.vmem [resolvable:$true] %s1591
      %1597 = dma.vmem_to_hbm [thread:$0]  %s1592, 1024, %s17, [#allocation14], 128, 128, 8
    $region93: #{tpu_custom_call.1} parent=1 // pred_fallthru
      _
    // Predicated region
    $region94: #{tpu_custom_call.1} parent=1 // pred_check
      _
    $region95: #{tpu_custom_call.1} parent=1 // pred_check_branch
      %1599 = sbr.rel (0) target = $region97
    $region96: #{tpu_custom_call.1} parent=1 // pred_region
      %1600 = dma.done [#allocation5], 256
    $region97: #{tpu_custom_call.1} parent=1 // pred_fallthru
      _
    // Predicated region
    $region98: #{tpu_custom_call.1} parent=1 // pred_check
      _
    $region99: #{tpu_custom_call.1} parent=1 // pred_check_branch
      %1602 = sbr.rel (0) target = $region101
    $region100: #{tpu_custom_call.1} parent=1 // pred_region
      %1603 = dma.done [#allocation14], 1024
    $region101: #{tpu_custom_call.1} parent=1 // pred_fallthru
      _
    %1604 = vsyncpa [#allocation4], 1
    %1605 = vsyncpa [#allocation7], 1
    %1606 = vsyncpa [#allocation10], 1
    %1607 = vsyncpa [#allocation5], 1
    %1608 = vsyncpa [#allocation14], 1

</llo_original>
